<compile_context>
chip_gen: v7x
topology: tpu7x:2x2x1
jax: 0.10.0
libtpu: 0.0.40
codegen_flags: <defaults>
</compile_context>

<pallas_src>
import math
from functools import partial

import jax
import jax.numpy as jnp
from jax.experimental import pallas as pl
from jax.experimental.pallas import tpu as pltpu


def amlp_kernel(x_ref, w1_ref, w2_ref, bvec_ref, o_ref, *, batch, cin, cout):
    # x_ref   : (B*Cin,  HW)  all images stacked along sublanes, spatial on lanes
    # w1_ref  : (Chid,  Cin)  fc1 weight, PyTorch (out_features, in_features)
    # w2_ref  : (Cout, Chid)  fc2 weight pre-scaled by StarReLU scale
    # bvec_ref: (Cout,    1)  StarReLU bias folded through fc2 (per-output-row const)
    # o_ref   : (B*Cout, HW)
    w1 = w1_ref[...]
    w2s = w2_ref[...]
    bvec = bvec_ref[...]

    outs = []
    for b in range(batch):                       # static B=2 unroll
        x = x_ref[b * cin:(b + 1) * cin, :]      # (Cin, HW) static slice
        # fc1: (Chid, Cin) @ (Cin, HW); N = HW lane-dense on the MXU.
        h = jnp.dot(w1, x,
                    preferred_element_type=jnp.float32,
                    precision=jax.lax.Precision.HIGHEST)
        # StarReLU (scale/bias folded into w2s/bvec): only relu + square here.
        r = jnp.maximum(h, 0.0)
        # Dropout(p=0) is identity.
        # fc2: (Cout, Chid) @ (Chid, HW) + folded bias.
        o = jnp.dot(w2s, r * r,
                    preferred_element_type=jnp.float32,
                    precision=jax.lax.Precision.HIGHEST) + bvec
        outs.append(o)

    # Single lane-dense, full-tile (B*Cout, HW) store.
    o_ref[...] = jnp.concatenate(outs, axis=0)


def amlp_pallas(x_nchw, w1, w2, scale, bias):
    """x_nchw: (B, Cin, H, W) f32.  w1: (Chid, Cin), w2: (Cout, Chid) in
    nn.Linear layout.  scale, bias: shape (1,) StarReLU parameters.
    Returns (B, Cout, H, W) f32 (NCHW), matching AMlp.forward."""
    B, Cin, H, W = x_nchw.shape
    Chid = w1.shape[0]
    Cout = w2.shape[0]
    HW = H * W

    # Free (contiguous) reshape: NCHW -> (B*Cin, H*W); spatial on lanes,
    # batch folded into sublane rows -> one full (8, 256) f32 input tile.
    x_flat = x_nchw.reshape(B * Cin, HW).astype(jnp.float32)

    # Fold StarReLU scalars into fc2 (exact):
    #   w2 @ (s * r^2 + b) == (s * w2) @ r^2 + b * w2.sum(axis=1, keepdims=True)
    s = scale.reshape(()).astype(jnp.float32)
    t = bias.reshape(()).astype(jnp.float32)
    w1f = w1.astype(jnp.float32)
    w2f = w2.astype(jnp.float32)
    w2_scaled = s * w2f                                         # (Cout, Chid)
    bias_vec = t * jnp.sum(w2f, axis=1, keepdims=True)          # (Cout, 1)

    flops = 2 * B * HW * (Cin * Chid + Chid * Cout)
    bytes_accessed = 4 * (x_flat.size + w1f.size + w2_scaled.size
                          + bias_vec.size + B * Cout * HW)

    kernel = partial(amlp_kernel, batch=B, cin=Cin, cout=Cout)

    out = pl.pallas_call(
        kernel,
        out_shape=jax.ShapeDtypeStruct((B * Cout, HW), jnp.float32),
        grid=(1,),
        in_specs=[
            pl.BlockSpec((B * Cin, HW), lambda i: (0, 0)),
            pl.BlockSpec((Chid, Cin), lambda i: (0, 0)),
            pl.BlockSpec((Cout, Chid), lambda i: (0, 0)),
            pl.BlockSpec((Cout, 1), lambda i: (0, 0)),
        ],
        out_specs=pl.BlockSpec((B * Cout, HW), lambda i: (0, 0)),
        compiler_params=pltpu.CompilerParams(
            dimension_semantics=("arbitrary",)),
        cost_estimate=pl.CostEstimate(
            flops=flops, transcendentals=0, bytes_accessed=bytes_accessed),
    )(x_flat, w1f, w2_scaled, bias_vec)

    # (B*Cout, HW) rows are [b0c0..b0c3, b1c0..b1c3] -> contiguous NCHW reshape.
    return out.reshape(B, Cout, H, W)


def amlp_reference(x_nchw, w1, w2, scale, bias):
    """Pure-JAX reference matching PyTorch AMlp.forward (drop=0, bias=False),
    with scale/bias applied exactly where StarReLU applies them."""
    x = jnp.transpose(x_nchw, (0, 2, 3, 1))                   # NCHW -> NHWC
    h = jnp.einsum('bhwc,dc->bhwd', x, w1,
                   precision=jax.lax.Precision.HIGHEST)       # fc1 (nn.Linear)
    h = scale * jnp.maximum(h, 0.0) ** 2 + bias               # StarReLU
    y = jnp.einsum('bhwc,dc->bhwd', h, w2,
                   precision=jax.lax.Precision.HIGHEST)       # fc2 (nn.Linear)
    return jnp.transpose(y, (0, 3, 1, 2))                     # NHWC -> NCHW


if __name__ == "__main__":
    B, Cin, H, W = 2, 4, 16, 16
    Chid = 32            # hidden_features default in AMlp
    Cout = Cin           # out_features defaults to in_features

    key = jax.random.PRNGKey(0)
    k0, k1, k2 = jax.random.split(key, 3)

    # NCHW input, nn.Linear-style weight init (~1/sqrt(fan_in)).
    x = jax.random.normal(k0, (B, Cin, H, W), jnp.float32)
    w1 = jax.random.normal(k1, (Chid, Cin), jnp.float32) / math.sqrt(Cin)
    w2 = jax.random.normal(k2, (Cout, Chid), jnp.float32) / math.sqrt(Chid)
    # StarReLU learnable scalars (defaults are 1.0 / 0.0; use nontrivial
    # values here so the activation path is actually exercised).
    scale = jnp.array([1.25], jnp.float32)
    bias = jnp.array([-0.05], jnp.float32)

    out = jax.block_until_ready(amlp_pallas(x, w1, w2, scale, bias))
    ref = jax.block_until_ready(amlp_reference(x, w1, w2, scale, bias))

    assert out.shape == (B, Cout, H, W), out.shape
    max_err = float(jnp.max(jnp.abs(out - ref)))
    assert jnp.allclose(out, ref, atol=1e-4, rtol=1e-4), max_err

    print("KERNEL_OK")
</pallas_src>

<mosaic_0001>
module attributes {stable_mosaic.version = 11 : i64} {
  func.func @amlp_kernel(%arg0: i32, %arg1: memref<8x256xf32, #tpu.memory_space<vmem>>, %arg2: memref<32x4xf32, #tpu.memory_space<vmem>>, %arg3: memref<4x32xf32, #tpu.memory_space<vmem>>, %arg4: memref<4x1xf32, #tpu.memory_space<vmem>>, %arg5: memref<8x256xf32, #tpu.memory_space<vmem>>) attributes {dimension_semantics = [#tpu.dimension_semantics<arbitrary>], iteration_bounds = array<i64: 1>, scalar_prefetch = 0 : i64, scratch_operands = 0 : i64, tpu.core_type = #tpu.core_type<tc>, window_params = [{pipeline_mode = #tpu.pipeline_mode<synchronous>, transform_indices = @transform_0, window_bounds = array<i64: 8, 256>}, {pipeline_mode = #tpu.pipeline_mode<synchronous>, transform_indices = @transform_1, window_bounds = array<i64: 32, 4>}, {pipeline_mode = #tpu.pipeline_mode<synchronous>, transform_indices = @transform_2, window_bounds = array<i64: 4, 32>}, {pipeline_mode = #tpu.pipeline_mode<synchronous>, transform_indices = @transform_3, window_bounds = array<i64: 4, 1>}, {pipeline_mode = #tpu.pipeline_mode<synchronous>, transform_indices = @transform_4, window_bounds = array<i64: 8, 256>}]} {
    %c0 = arith.constant 0 : index
    %c0_0 = arith.constant 0 : index
    %0 = vector.load %arg2[%c0, %c0_0] : memref<32x4xf32, #tpu.memory_space<vmem>>, vector<32x4xf32>
    %c0_1 = arith.constant 0 : index
    %c0_2 = arith.constant 0 : index
    %1 = vector.load %arg3[%c0_1, %c0_2] : memref<4x32xf32, #tpu.memory_space<vmem>>, vector<4x32xf32>
    %c0_3 = arith.constant 0 : index
    %c0_4 = arith.constant 0 : index
    %2 = vector.load %arg4[%c0_3, %c0_4] : memref<4x1xf32, #tpu.memory_space<vmem>>, vector<4x1xf32>
    %c0_5 = arith.constant 0 : index
    %c0_6 = arith.constant 0 : index
    %3 = vector.load %arg1[%c0_5, %c0_6] : memref<8x256xf32, #tpu.memory_space<vmem>>, vector<4x256xf32>
    %cst = arith.constant dense<0.000000e+00> : vector<32x256xf32>
    %4 = tpu.matmul %0, %3, %cst {dimension_numbers = #tpu.dot_dimension_numbers<[1], [0], [0], [1], [0, 0, 1, 1], [], []>, precision = #tpu.contract_precision<fp32>} : vector<32x4xf32>, vector<4x256xf32>, vector<32x256xf32> -> vector<32x256xf32>
    %cst_7 = arith.constant 0.000000e+00 : f32
    %5 = vector.broadcast %cst_7 : f32 to vector<32x256xf32>
    %6 = arith.maximumf %4, %5 : vector<32x256xf32>
    %7 = arith.mulf %6, %6 : vector<32x256xf32>
    %cst_8 = arith.constant dense<0.000000e+00> : vector<4x256xf32>
    %8 = tpu.matmul %1, %7, %cst_8 {dimension_numbers = #tpu.dot_dimension_numbers<[1], [0], [0], [1], [0, 0, 1, 1], [], []>, precision = #tpu.contract_precision<fp32>} : vector<4x32xf32>, vector<32x256xf32>, vector<4x256xf32> -> vector<4x256xf32>
    %9 = vector.broadcast %2 : vector<4x1xf32> to vector<4x256xf32>
    %10 = arith.addf %8, %9 : vector<4x256xf32>
    %c4 = arith.constant 4 : index
    %c0_9 = arith.constant 0 : index
    %11 = vector.load %arg1[%c4, %c0_9] : memref<8x256xf32, #tpu.memory_space<vmem>>, vector<4x256xf32>
    %cst_10 = arith.constant dense<0.000000e+00> : vector<32x256xf32>
    %12 = tpu.matmul %0, %11, %cst_10 {dimension_numbers = #tpu.dot_dimension_numbers<[1], [0], [0], [1], [0, 0, 1, 1], [], []>, precision = #tpu.contract_precision<fp32>} : vector<32x4xf32>, vector<4x256xf32>, vector<32x256xf32> -> vector<32x256xf32>
    %cst_11 = arith.constant 0.000000e+00 : f32
    %13 = vector.broadcast %cst_11 : f32 to vector<32x256xf32>
    %14 = arith.maximumf %12, %13 : vector<32x256xf32>
    %15 = arith.mulf %14, %14 : vector<32x256xf32>
    %cst_12 = arith.constant dense<0.000000e+00> : vector<4x256xf32>
    %16 = tpu.matmul %1, %15, %cst_12 {dimension_numbers = #tpu.dot_dimension_numbers<[1], [0], [0], [1], [0, 0, 1, 1], [], []>, precision = #tpu.contract_precision<fp32>} : vector<4x32xf32>, vector<32x256xf32>, vector<4x256xf32> -> vector<4x256xf32>
    %17 = vector.broadcast %2 : vector<4x1xf32> to vector<4x256xf32>
    %18 = arith.addf %16, %17 : vector<4x256xf32>
    %19 = tpu.concatenate %10, %18 in 0 : vector<4x256xf32>, vector<4x256xf32> -> vector<8x256xf32>
    %c0_13 = arith.constant 0 : index
    %c0_14 = arith.constant 0 : index
    %20 = vector.load %arg5[%c0_13, %c0_14] : memref<8x256xf32, #tpu.memory_space<vmem>>, vector<8x256xf32>
    tpu.vector_store %arg5[%c0_13, %c0_14], %19 {strides = array<i32>} : memref<8x256xf32, #tpu.memory_space<vmem>>, vector<8x256xf32>,
    return
  }
  func.func @transform_0(%arg0: i32) -> (i32, i32) {
    %c0_i32 = arith.constant 0 : i32
    %c0_i32_0 = arith.constant 0 : i32
    %c0_i32_1 = arith.constant 0 : i32
    return %c0_i32, %c0_i32_0 : i32, i32
  }
  func.func @transform_1(%arg0: i32) -> (i32, i32) {
    %c0_i32 = arith.constant 0 : i32
    %c0_i32_0 = arith.constant 0 : i32
    %c0_i32_1 = arith.constant 0 : i32
    return %c0_i32, %c0_i32_0 : i32, i32
  }
  func.func @transform_2(%arg0: i32) -> (i32, i32) {
    %c0_i32 = arith.constant 0 : i32
    %c0_i32_0 = arith.constant 0 : i32
    %c0_i32_1 = arith.constant 0 : i32
    return %c0_i32, %c0_i32_0 : i32, i32
  }
  func.func @transform_3(%arg0: i32) -> (i32, i32) {
    %c0_i32 = arith.constant 0 : i32
    %c0_i32_0 = arith.constant 0 : i32
    %c0_i32_1 = arith.constant 0 : i32
    return %c0_i32, %c0_i32_0 : i32, i32
  }
  func.func @transform_4(%arg0: i32) -> (i32, i32) {
    %c0_i32 = arith.constant 0 : i32
    %c0_i32_0 = arith.constant 0 : i32
    %c0_i32_1 = arith.constant 0 : i32
    return %c0_i32, %c0_i32_0 : i32, i32
  }
}

</mosaic_0001>

<llo_original>
// kernel: tpu_custom_call.1
$region0: #{tpu_custom_call.1}
  #allocation0 [shape = 'u32[]', space=smem, size = 0x4, offset = 0x4, fixed_abs, tag = 'smem constant byte address 0x4 - core index']
  #allocation1 [shape = 'u32[144,128]{1,0:T(1,128)}', space=vmem, size = 0x12000, scoped, tag = 'internal scratch']
  %s0 = inlined_call_operand.vmem [shape: f32[8,256], index: 0, kind: input, shape index: {}]
  %s1 = inlined_call_operand.vmem [shape: f32[32,4], index: 1, kind: input, shape index: {}]
  %s2 = inlined_call_operand.vmem [shape: f32[4,32], index: 2, kind: input, shape index: {}]
  %s3 = inlined_call_operand.vmem [shape: f32[4,1], index: 3, kind: input, shape index: {}]
  %s4 = inlined_call_operand.hbm [shape: f32[8,256], index: 4, kind: output, shape index: {}]
  %s5 = sld [smem:[#allocation0]]
  $region26: #{tpu_custom_call.1} parent=0
    _
  %s7 = ssub.s32 1, %s5
  %s8 = scalar_select 0, %s7, %s5
  $region1: #{tpu_custom_call.1} parent=0
    #allocation2 [shape = 'u8[8192]{0}', space=vmem, size = 0x2000, scoped, tag = 'output window, operand 0, single buffered']
    #allocation3 [shape = 's32[1]{0}', space=sflag, size = 0x4, scoped, tag = 'scoped memory for tpu_custom_call.1']
    %9 = vsyncpa [#allocation3], 0
    // Predicated region
    $region2: #{tpu_custom_call.1} parent=1 // pred_check
      _
    $region3: #{tpu_custom_call.1} parent=1 // pred_check_branch
      %11 = sbr.rel (0) target = $region5
    $region4: #{tpu_custom_call.1} parent=1 // pred_region
      _
    $region5: #{tpu_custom_call.1} parent=1 // pred_fallthru
      _
    // Predicated region
    $region6: #{tpu_custom_call.1} parent=1 // pred_check
      _
    $region7: #{tpu_custom_call.1} parent=1 // pred_check_branch
      %13 = sbr.rel (0) target = $region9
    $region8: #{tpu_custom_call.1} parent=1 // pred_region
      _
    $region9: #{tpu_custom_call.1} parent=1 // pred_fallthru
      _
    // Predicated region
    $region10: #{tpu_custom_call.1} parent=1 // pred_check
      _
    $region11: #{tpu_custom_call.1} parent=1 // pred_check_branch
      %15 = sbr.rel (0) target = $region13
    $region12: #{tpu_custom_call.1} parent=1 // pred_region
      _
    $region13: #{tpu_custom_call.1} parent=1 // pred_fallthru
      _
    // Predicated region
    $region14: #{tpu_custom_call.1} parent=1 // pred_check
      _
    $region15: #{tpu_custom_call.1} parent=1 // pred_check_branch
      %17 = sbr.rel (0) target = $region17
    $region16: #{tpu_custom_call.1} parent=1 // pred_region
      _
    $region17: #{tpu_custom_call.1} parent=1 // pred_fallthru
      _
    %v18 = vld [vmem:[%s1] sm:$0xff]
    %v19 = vld [vmem:[%s1 + $0x8] sm:$0xff]
    %v20 = vld [vmem:[%s1 + $0x10] sm:$0xff]
    %v21 = vld [vmem:[%s1 + $0x18] sm:$0xff]
    %v22 = vld [vmem:[%s2] sm:$0xf]
    %v23 = vld [vmem:[%s3] sm:$0xf]
    %v24 = vld [vmem:[%s0] sm:$0xf]
    %v25 = vld [vmem:[%s0 + $0x8] sm:$0xf]
    %vm26 = vcmask 31744
    %v28 = vsel %vm26, %v18, 0
    %v31 = vsel %vm26, %v19, 0
    %v34 = vsel %vm26, %v20, 0
    %v37 = vsel %vm26, %v21, 0
    %vm39 = vcmask 1043456
    %v41 = vsel %vm39, %v24, 0
    %v44 = vsel %vm39, %v25, 0
    %v46 = vand.u32 %v44, 4294901760
    %47 = vmatprep.subr.mxu0 %v46
    %v48 = vand.u32 %v41, 4294901760
    %49 = vmatpush1.msra.mxu0 %v48
    %50 = vmatprep.subr.mxu0 0.0
    %51 = vmatpush1.msra.mxu0 0.0
    %52 = vmatprep.subr.mxu0 0.0
    %53 = vmatpush1.msra.mxu0 0.0
    %54 = vmatprep.subr.mxu0 0.0
    %55 = vmatpush1.msra.mxu0 0.0
    %56 = vmatprep.subr.mxu0 0.0
    %57 = vmatpush1.msra.mxu0 0.0
    %58 = vmatprep.subr.mxu0 0.0
    %59 = vmatpush1.msra.mxu0 0.0
    %60 = vmatprep.subr.mxu0 0.0
    %61 = vmatpush1.msra.mxu0 0.0
    %62 = vmatprep.subr.mxu0 0.0
    %63 = vmatpush1.msra.mxu0 0.0
    %64 = vmatprep.subr.mxu0 0.0
    %65 = vmatpush1.msra.mxu0 0.0
    %66 = vmatprep.subr.mxu0 0.0
    %67 = vmatpush1.msra.mxu0 0.0
    %68 = vmatprep.subr.mxu0 0.0
    %69 = vmatpush1.msra.mxu0 0.0
    %70 = vmatprep.subr.mxu0 0.0
    %71 = vmatpush1.msra.mxu0 0.0
    %72 = vmatprep.subr.mxu0 0.0
    %73 = vmatpush1.msra.mxu0 0.0
    %74 = vmatprep.subr.mxu0 0.0
    %75 = vmatpush1.msra.mxu0 0.0
    %76 = vmatprep.subr.mxu0 0.0
    %77 = vmatpush1.msra.mxu0 0.0
    %78 = vmatprep.subr.mxu0 0.0
    %79 = vmatpush1.msra.mxu0 0.0
    %80 = vmatprep.subr.mxu0 0.0
    %81 = vmatpush1.msra.mxu0 0.0
    %82 = vmatprep.subr.mxu0 0.0
    %83 = vmatpush1.msra.mxu0 0.0
    %84 = vmatprep.subr.mxu0 0.0
    %85 = vmatpush1.msra.mxu0 0.0
    %86 = vmatprep.subr.mxu0 0.0
    %87 = vmatpush1.msra.mxu0 0.0
    %88 = vmatprep.subr.mxu0 0.0
    %89 = vmatpush1.msra.mxu0 0.0
    %90 = vmatprep.subr.mxu0 0.0
    %91 = vmatpush1.msra.mxu0 0.0
    %92 = vmatprep.subr.mxu0 0.0
    %93 = vmatpush1.msra.mxu0 0.0
    %94 = vmatprep.subr.mxu0 0.0
    %95 = vmatpush1.msra.mxu0 0.0
    %96 = vmatprep.subr.mxu0 0.0
    %97 = vmatpush1.msra.mxu0 0.0
    %98 = vmatprep.subr.mxu0 0.0
    %99 = vmatpush1.msra.mxu0 0.0
    %100 = vmatprep.subr.mxu0 0.0
    %101 = vmatpush1.msra.mxu0 0.0
    %102 = vmatprep.subr.mxu0 0.0
    %103 = vmatpush1.msra.mxu0 0.0
    %104 = vmatprep.subr.mxu0 0.0
    %105 = vmatpush1.msra.mxu0 0.0
    %106 = vmatprep.subr.mxu0 0.0
    %107 = vmatpush1.msra.mxu0 0.0
    %108 = vmatprep.subr.mxu0 0.0
    %109 = vmatpush1.msra.mxu0 0.0
    %110 = vmatprep.subr.mxu0 0.0
    %111 = vmatpush1.msra.mxu0 0.0
    %112 = vmatprep.mubr.f32.mxu0 0.0
    %v113 = vand.u32 %v28, 4294901760
    %v114 = vsub.f32 %v28, %v113
    %v115 = vand.u32 %v114, 4294901760
    %v116 = vsub.f32 %v114, %v115
    %v117 = vand.u32 %v116, 4294901760
    %118 = vmatmul.mubr.f32.gmra.mrb[0].mxu0 %v117
    %v119 = vpop.f32.mrb[0].mxu0
    %v120 = vadd.f32 0.0, %v119
    %v121 = vpop.f32.mrb[0].mxu0
    %v122 = vadd.f32 0.0, %v121
    %123 = vmatprep.mubr.f32.mxu0 0.0
    %v124 = vand.u32 %v31, 4294901760
    %v125 = vsub.f32 %v31, %v124
    %v126 = vand.u32 %v125, 4294901760
    %v127 = vsub.f32 %v125, %v126
    %v128 = vand.u32 %v127, 4294901760
    %129 = vmatmul.mubr.f32.gmra.mrb[0].mxu0 %v128
    %v130 = vpop.f32.mrb[0].mxu0
    %v131 = vadd.f32 0.0, %v130
    %v132 = vpop.f32.mrb[0].mxu0
    %v133 = vadd.f32 0.0, %v132
    %134 = vmatprep.mubr.f32.mxu0 0.0
    %v135 = vand.u32 %v34, 4294901760
    %v136 = vsub.f32 %v34, %v135
    %v137 = vand.u32 %v136, 4294901760
    %v138 = vsub.f32 %v136, %v137
    %v139 = vand.u32 %v138, 4294901760
    %140 = vmatmul.mubr.f32.gmra.mrb[0].mxu0 %v139
    %v141 = vpop.f32.mrb[0].mxu0
    %v142 = vadd.f32 0.0, %v141
    %v143 = vpop.f32.mrb[0].mxu0
    %v144 = vadd.f32 0.0, %v143
    %145 = vmatprep.mubr.f32.mxu0 0.0
    %v146 = vand.u32 %v37, 4294901760
    %v147 = vsub.f32 %v37, %v146
    %v148 = vand.u32 %v147, 4294901760
    %v149 = vsub.f32 %v147, %v148
    %v150 = vand.u32 %v149, 4294901760
    %151 = vmatmul.mubr.f32.gmra.mrb[0].mxu0 %v150
    %v152 = vpop.f32.mrb[0].mxu0
    %v153 = vadd.f32 0.0, %v152
    %v154 = vpop.f32.mrb[0].mxu0
    %v155 = vadd.f32 0.0, %v154
    %156 = vdwg.mxu0
    %v157 = vand.u32 %v44, 4294901760
    %v158 = vsub.f32 %v44, %v157
    %v159 = vand.u32 %v158, 4294901760
    %v160 = vsub.f32 %v158, %v159
    %v161 = vand.u32 %v160, 4294901760
    %162 = vmatprep.subr.mxu0 %v161
    %v163 = vand.u32 %v41, 4294901760
    %v164 = vsub.f32 %v41, %v163
    %v165 = vand.u32 %v164, 4294901760
    %v166 = vsub.f32 %v164, %v165
    %v167 = vand.u32 %v166, 4294901760
    %168 = vmatpush1.msra.mxu0 %v167
    %169 = vmatprep.subr.mxu0 0.0
    %170 = vmatpush1.msra.mxu0 0.0
    %171 = vmatprep.subr.mxu0 0.0
    %172 = vmatpush1.msra.mxu0 0.0
    %173 = vmatprep.subr.mxu0 0.0
    %174 = vmatpush1.msra.mxu0 0.0
    %175 = vmatprep.subr.mxu0 0.0
    %176 = vmatpush1.msra.mxu0 0.0
    %177 = vmatprep.subr.mxu0 0.0
    %178 = vmatpush1.msra.mxu0 0.0
    %179 = vmatprep.subr.mxu0 0.0
    %180 = vmatpush1.msra.mxu0 0.0
    %181 = vmatprep.subr.mxu0 0.0
    %182 = vmatpush1.msra.mxu0 0.0
    %183 = vmatprep.subr.mxu0 0.0
    %184 = vmatpush1.msra.mxu0 0.0
    %185 = vmatprep.subr.mxu0 0.0
    %186 = vmatpush1.msra.mxu0 0.0
    %187 = vmatprep.subr.mxu0 0.0
    %188 = vmatpush1.msra.mxu0 0.0
    %189 = vmatprep.subr.mxu0 0.0
    %190 = vmatpush1.msra.mxu0 0.0
    %191 = vmatprep.subr.mxu0 0.0
    %192 = vmatpush1.msra.mxu0 0.0
    %193 = vmatprep.subr.mxu0 0.0
    %194 = vmatpush1.msra.mxu0 0.0
    %195 = vmatprep.subr.mxu0 0.0
    %196 = vmatpush1.msra.mxu0 0.0
    %197 = vmatprep.subr.mxu0 0.0
    %198 = vmatpush1.msra.mxu0 0.0
    %199 = vmatprep.subr.mxu0 0.0
    %200 = vmatpush1.msra.mxu0 0.0
    %201 = vmatprep.subr.mxu0 0.0
    %202 = vmatpush1.msra.mxu0 0.0
    %203 = vmatprep.subr.mxu0 0.0
    %204 = vmatpush1.msra.mxu0 0.0
    %205 = vmatprep.subr.mxu0 0.0
    %206 = vmatpush1.msra.mxu0 0.0
    %207 = vmatprep.subr.mxu0 0.0
    %208 = vmatpush1.msra.mxu0 0.0
    %209 = vmatprep.subr.mxu0 0.0
    %210 = vmatpush1.msra.mxu0 0.0
    %211 = vmatprep.subr.mxu0 0.0
    %212 = vmatpush1.msra.mxu0 0.0
    %213 = vmatprep.subr.mxu0 0.0
    %214 = vmatpush1.msra.mxu0 0.0
    %215 = vmatprep.subr.mxu0 0.0
    %216 = vmatpush1.msra.mxu0 0.0
    %217 = vmatprep.subr.mxu0 0.0
    %218 = vmatpush1.msra.mxu0 0.0
    %219 = vmatprep.subr.mxu0 0.0
    %220 = vmatpush1.msra.mxu0 0.0
    %221 = vmatprep.subr.mxu0 0.0
    %222 = vmatpush1.msra.mxu0 0.0
    %223 = vmatprep.subr.mxu0 0.0
    %224 = vmatpush1.msra.mxu0 0.0
    %225 = vmatprep.subr.mxu0 0.0
    %226 = vmatpush1.msra.mxu0 0.0
    %227 = vmatprep.subr.mxu0 0.0
    %228 = vmatpush1.msra.mxu0 0.0
    %229 = vmatprep.subr.mxu0 0.0
    %230 = vmatpush1.msra.mxu0 0.0
    %231 = vmatprep.mubr.f32.mxu0 0.0
    %v232 = vand.u32 %v28, 4294901760
    %233 = vmatmul.mubr.f32.gmra.mrb[0].mxu0 %v232
    %v234 = vpop.f32.mrb[0].mxu0
    %v235 = vadd.f32 %v120, %v234
    %v236 = vpop.f32.mrb[0].mxu0
    %v237 = vadd.f32 %v122, %v236
    %238 = vmatprep.mubr.f32.mxu0 0.0
    %v239 = vand.u32 %v31, 4294901760
    %240 = vmatmul.mubr.f32.gmra.mrb[0].mxu0 %v239
    %v241 = vpop.f32.mrb[0].mxu0
    %v242 = vadd.f32 %v131, %v241
    %v243 = vpop.f32.mrb[0].mxu0
    %v244 = vadd.f32 %v133, %v243
    %245 = vmatprep.mubr.f32.mxu0 0.0
    %v246 = vand.u32 %v34, 4294901760
    %247 = vmatmul.mubr.f32.gmra.mrb[0].mxu0 %v246
    %v248 = vpop.f32.mrb[0].mxu0
    %v249 = vadd.f32 %v142, %v248
    %v250 = vpop.f32.mrb[0].mxu0
    %v251 = vadd.f32 %v144, %v250
    %252 = vmatprep.mubr.f32.mxu0 0.0
    %v253 = vand.u32 %v37, 4294901760
    %254 = vmatmul.mubr.f32.gmra.mrb[0].mxu0 %v253
    %v255 = vpop.f32.mrb[0].mxu0
    %v256 = vadd.f32 %v153, %v255
    %v257 = vpop.f32.mrb[0].mxu0
    %v258 = vadd.f32 %v155, %v257
    %259 = vdwg.mxu0
    %v260 = vand.u32 %v44, 4294901760
    %v261 = vsub.f32 %v44, %v260
    %262 = vmatprep.subr.mxu0 %v261
    %v263 = vand.u32 %v41, 4294901760
    %v264 = vsub.f32 %v41, %v263
    %265 = vmatpush1.msra.mxu0 %v264
    %266 = vmatprep.subr.mxu0 0.0
    %267 = vmatpush1.msra.mxu0 0.0
    %268 = vmatprep.subr.mxu0 0.0
    %269 = vmatpush1.msra.mxu0 0.0
    %270 = vmatprep.subr.mxu0 0.0
    %271 = vmatpush1.msra.mxu0 0.0
    %272 = vmatprep.subr.mxu0 0.0
    %273 = vmatpush1.msra.mxu0 0.0
    %274 = vmatprep.subr.mxu0 0.0
    %275 = vmatpush1.msra.mxu0 0.0
    %276 = vmatprep.subr.mxu0 0.0
    %277 = vmatpush1.msra.mxu0 0.0
    %278 = vmatprep.subr.mxu0 0.0
    %279 = vmatpush1.msra.mxu0 0.0
    %280 = vmatprep.subr.mxu0 0.0
    %281 = vmatpush1.msra.mxu0 0.0
    %282 = vmatprep.subr.mxu0 0.0
    %283 = vmatpush1.msra.mxu0 0.0
    %284 = vmatprep.subr.mxu0 0.0
    %285 = vmatpush1.msra.mxu0 0.0
    %286 = vmatprep.subr.mxu0 0.0
    %287 = vmatpush1.msra.mxu0 0.0
    %288 = vmatprep.subr.mxu0 0.0
    %289 = vmatpush1.msra.mxu0 0.0
    %290 = vmatprep.subr.mxu0 0.0
    %291 = vmatpush1.msra.mxu0 0.0
    %292 = vmatprep.subr.mxu0 0.0
    %293 = vmatpush1.msra.mxu0 0.0
    %294 = vmatprep.subr.mxu0 0.0
    %295 = vmatpush1.msra.mxu0 0.0
    %296 = vmatprep.subr.mxu0 0.0
    %297 = vmatpush1.msra.mxu0 0.0
    %298 = vmatprep.subr.mxu0 0.0
    %299 = vmatpush1.msra.mxu0 0.0
    %300 = vmatprep.subr.mxu0 0.0
    %301 = vmatpush1.msra.mxu0 0.0
    %302 = vmatprep.subr.mxu0 0.0
    %303 = vmatpush1.msra.mxu0 0.0
    %304 = vmatprep.subr.mxu0 0.0
    %305 = vmatpush1.msra.mxu0 0.0
    %306 = vmatprep.subr.mxu0 0.0
    %307 = vmatpush1.msra.mxu0 0.0
    %308 = vmatprep.subr.mxu0 0.0
    %309 = vmatpush1.msra.mxu0 0.0
    %310 = vmatprep.subr.mxu0 0.0
    %311 = vmatpush1.msra.mxu0 0.0
    %312 = vmatprep.subr.mxu0 0.0
    %313 = vmatpush1.msra.mxu0 0.0
    %314 = vmatprep.subr.mxu0 0.0
    %315 = vmatpush1.msra.mxu0 0.0
    %316 = vmatprep.subr.mxu0 0.0
    %317 = vmatpush1.msra.mxu0 0.0
    %318 = vmatprep.subr.mxu0 0.0
    %319 = vmatpush1.msra.mxu0 0.0
    %320 = vmatprep.subr.mxu0 0.0
    %321 = vmatpush1.msra.mxu0 0.0
    %322 = vmatprep.subr.mxu0 0.0
    %323 = vmatpush1.msra.mxu0 0.0
    %324 = vmatprep.subr.mxu0 0.0
    %325 = vmatpush1.msra.mxu0 0.0
    %326 = vmatprep.subr.mxu0 0.0
    %327 = vmatpush1.msra.mxu0 0.0
    %328 = vmatprep.mubr.f32.mxu0 0.0
    %v329 = vand.u32 %v28, 4294901760
    %v330 = vsub.f32 %v28, %v329
    %331 = vmatmul.mubr.f32.gmra.mrb[0].mxu0 %v330
    %v332 = vpop.f32.mrb[0].mxu0
    %v333 = vadd.f32 %v235, %v332
    %v334 = vpop.f32.mrb[0].mxu0
    %v335 = vadd.f32 %v237, %v334
    %336 = vmatprep.mubr.f32.mxu0 0.0
    %v337 = vand.u32 %v31, 4294901760
    %v338 = vsub.f32 %v31, %v337
    %339 = vmatmul.mubr.f32.gmra.mrb[0].mxu0 %v338
    %v340 = vpop.f32.mrb[0].mxu0
    %v341 = vadd.f32 %v242, %v340
    %v342 = vpop.f32.mrb[0].mxu0
    %v343 = vadd.f32 %v244, %v342
    %344 = vmatprep.mubr.f32.mxu0 0.0
    %v345 = vand.u32 %v34, 4294901760
    %v346 = vsub.f32 %v34, %v345
    %347 = vmatmul.mubr.f32.gmra.mrb[0].mxu0 %v346
    %v348 = vpop.f32.mrb[0].mxu0
    %v349 = vadd.f32 %v249, %v348
    %v350 = vpop.f32.mrb[0].mxu0
    %v351 = vadd.f32 %v251, %v350
    %352 = vmatprep.mubr.f32.mxu0 0.0
    %v353 = vand.u32 %v37, 4294901760
    %v354 = vsub.f32 %v37, %v353
    %355 = vmatmul.mubr.f32.gmra.mrb[0].mxu0 %v354
    %v356 = vpop.f32.mrb[0].mxu0
    %v357 = vadd.f32 %v256, %v356
    %v358 = vpop.f32.mrb[0].mxu0
    %v359 = vadd.f32 %v258, %v358
    %360 = vdwg.mxu0
    %v361 = vand.u32 %v44, 4294901760
    %362 = vmatprep.subr.mxu0 %v361
    %v363 = vand.u32 %v41, 4294901760
    %364 = vmatpush1.msra.mxu0 %v363
    %365 = vmatprep.subr.mxu0 0.0
    %366 = vmatpush1.msra.mxu0 0.0
    %367 = vmatprep.subr.mxu0 0.0
    %368 = vmatpush1.msra.mxu0 0.0
    %369 = vmatprep.subr.mxu0 0.0
    %370 = vmatpush1.msra.mxu0 0.0
    %371 = vmatprep.subr.mxu0 0.0
    %372 = vmatpush1.msra.mxu0 0.0
    %373 = vmatprep.subr.mxu0 0.0
    %374 = vmatpush1.msra.mxu0 0.0
    %375 = vmatprep.subr.mxu0 0.0
    %376 = vmatpush1.msra.mxu0 0.0
    %377 = vmatprep.subr.mxu0 0.0
    %378 = vmatpush1.msra.mxu0 0.0
    %379 = vmatprep.subr.mxu0 0.0
    %380 = vmatpush1.msra.mxu0 0.0
    %381 = vmatprep.subr.mxu0 0.0
    %382 = vmatpush1.msra.mxu0 0.0
    %383 = vmatprep.subr.mxu0 0.0
    %384 = vmatpush1.msra.mxu0 0.0
    %385 = vmatprep.subr.mxu0 0.0
    %386 = vmatpush1.msra.mxu0 0.0
    %387 = vmatprep.subr.mxu0 0.0
    %388 = vmatpush1.msra.mxu0 0.0
    %389 = vmatprep.subr.mxu0 0.0
    %390 = vmatpush1.msra.mxu0 0.0
    %391 = vmatprep.subr.mxu0 0.0
    %392 = vmatpush1.msra.mxu0 0.0
    %393 = vmatprep.subr.mxu0 0.0
    %394 = vmatpush1.msra.mxu0 0.0
    %395 = vmatprep.subr.mxu0 0.0
    %396 = vmatpush1.msra.mxu0 0.0
    %397 = vmatprep.subr.mxu0 0.0
    %398 = vmatpush1.msra.mxu0 0.0
    %399 = vmatprep.subr.mxu0 0.0
    %400 = vmatpush1.msra.mxu0 0.0
    %401 = vmatprep.subr.mxu0 0.0
    %402 = vmatpush1.msra.mxu0 0.0
    %403 = vmatprep.subr.mxu0 0.0
    %404 = vmatpush1.msra.mxu0 0.0
    %405 = vmatprep.subr.mxu0 0.0
    %406 = vmatpush1.msra.mxu0 0.0
    %407 = vmatprep.subr.mxu0 0.0
    %408 = vmatpush1.msra.mxu0 0.0
    %409 = vmatprep.subr.mxu0 0.0
    %410 = vmatpush1.msra.mxu0 0.0
    %411 = vmatprep.subr.mxu0 0.0
    %412 = vmatpush1.msra.mxu0 0.0
    %413 = vmatprep.subr.mxu0 0.0
    %414 = vmatpush1.msra.mxu0 0.0
    %415 = vmatprep.subr.mxu0 0.0
    %416 = vmatpush1.msra.mxu0 0.0
    %417 = vmatprep.subr.mxu0 0.0
    %418 = vmatpush1.msra.mxu0 0.0
    %419 = vmatprep.subr.mxu0 0.0
    %420 = vmatpush1.msra.mxu0 0.0
    %421 = vmatprep.subr.mxu0 0.0
    %422 = vmatpush1.msra.mxu0 0.0
    %423 = vmatprep.subr.mxu0 0.0
    %424 = vmatpush1.msra.mxu0 0.0
    %425 = vmatprep.subr.mxu0 0.0
    %426 = vmatpush1.msra.mxu0 0.0
    %427 = vmatprep.mubr.f32.mxu0 0.0
    %v428 = vand.u32 %v28, 4294901760
    %v429 = vsub.f32 %v28, %v428
    %v430 = vand.u32 %v429, 4294901760
    %431 = vmatmul.mubr.f32.gmra.mrb[0].mxu0 %v430
    %v432 = vpop.f32.mrb[0].mxu0
    %v433 = vadd.f32 %v333, %v432
    %v434 = vpop.f32.mrb[0].mxu0
    %v435 = vadd.f32 %v335, %v434
    %436 = vmatprep.mubr.f32.mxu0 0.0
    %v437 = vand.u32 %v31, 4294901760
    %v438 = vsub.f32 %v31, %v437
    %v439 = vand.u32 %v438, 4294901760
    %440 = vmatmul.mubr.f32.gmra.mrb[0].mxu0 %v439
    %v441 = vpop.f32.mrb[0].mxu0
    %v442 = vadd.f32 %v341, %v441
    %v443 = vpop.f32.mrb[0].mxu0
    %v444 = vadd.f32 %v343, %v443
    %445 = vmatprep.mubr.f32.mxu0 0.0
    %v446 = vand.u32 %v34, 4294901760
    %v447 = vsub.f32 %v34, %v446
    %v448 = vand.u32 %v447, 4294901760
    %449 = vmatmul.mubr.f32.gmra.mrb[0].mxu0 %v448
    %v450 = vpop.f32.mrb[0].mxu0
    %v451 = vadd.f32 %v349, %v450
    %v452 = vpop.f32.mrb[0].mxu0
    %v453 = vadd.f32 %v351, %v452
    %454 = vmatprep.mubr.f32.mxu0 0.0
    %v455 = vand.u32 %v37, 4294901760
    %v456 = vsub.f32 %v37, %v455
    %v457 = vand.u32 %v456, 4294901760
    %458 = vmatmul.mubr.f32.gmra.mrb[0].mxu0 %v457
    %v459 = vpop.f32.mrb[0].mxu0
    %v460 = vadd.f32 %v357, %v459
    %v461 = vpop.f32.mrb[0].mxu0
    %v462 = vadd.f32 %v359, %v461
    %463 = vdwg.mxu0
    %v464 = vand.u32 %v44, 4294901760
    %v465 = vsub.f32 %v44, %v464
    %v466 = vand.u32 %v465, 4294901760
    %467 = vmatprep.subr.mxu0 %v466
    %v468 = vand.u32 %v41, 4294901760
    %v469 = vsub.f32 %v41, %v468
    %v470 = vand.u32 %v469, 4294901760
    %471 = vmatpush1.msra.mxu0 %v470
    %472 = vmatprep.subr.mxu0 0.0
    %473 = vmatpush1.msra.mxu0 0.0
    %474 = vmatprep.subr.mxu0 0.0
    %475 = vmatpush1.msra.mxu0 0.0
    %476 = vmatprep.subr.mxu0 0.0
    %477 = vmatpush1.msra.mxu0 0.0
    %478 = vmatprep.subr.mxu0 0.0
    %479 = vmatpush1.msra.mxu0 0.0
    %480 = vmatprep.subr.mxu0 0.0
    %481 = vmatpush1.msra.mxu0 0.0
    %482 = vmatprep.subr.mxu0 0.0
    %483 = vmatpush1.msra.mxu0 0.0
    %484 = vmatprep.subr.mxu0 0.0
    %485 = vmatpush1.msra.mxu0 0.0
    %486 = vmatprep.subr.mxu0 0.0
    %487 = vmatpush1.msra.mxu0 0.0
    %488 = vmatprep.subr.mxu0 0.0
    %489 = vmatpush1.msra.mxu0 0.0
    %490 = vmatprep.subr.mxu0 0.0
    %491 = vmatpush1.msra.mxu0 0.0
    %492 = vmatprep.subr.mxu0 0.0
    %493 = vmatpush1.msra.mxu0 0.0
    %494 = vmatprep.subr.mxu0 0.0
    %495 = vmatpush1.msra.mxu0 0.0
    %496 = vmatprep.subr.mxu0 0.0
    %497 = vmatpush1.msra.mxu0 0.0
    %498 = vmatprep.subr.mxu0 0.0
    %499 = vmatpush1.msra.mxu0 0.0
    %500 = vmatprep.subr.mxu0 0.0
    %501 = vmatpush1.msra.mxu0 0.0
    %502 = vmatprep.subr.mxu0 0.0
    %503 = vmatpush1.msra.mxu0 0.0
    %504 = vmatprep.subr.mxu0 0.0
    %505 = vmatpush1.msra.mxu0 0.0
    %506 = vmatprep.subr.mxu0 0.0
    %507 = vmatpush1.msra.mxu0 0.0
    %508 = vmatprep.subr.mxu0 0.0
    %509 = vmatpush1.msra.mxu0 0.0
    %510 = vmatprep.subr.mxu0 0.0
    %511 = vmatpush1.msra.mxu0 0.0
    %512 = vmatprep.subr.mxu0 0.0
    %513 = vmatpush1.msra.mxu0 0.0
    %514 = vmatprep.subr.mxu0 0.0
    %515 = vmatpush1.msra.mxu0 0.0
    %516 = vmatprep.subr.mxu0 0.0
    %517 = vmatpush1.msra.mxu0 0.0
    %518 = vmatprep.subr.mxu0 0.0
    %519 = vmatpush1.msra.mxu0 0.0
    %520 = vmatprep.subr.mxu0 0.0
    %521 = vmatpush1.msra.mxu0 0.0
    %522 = vmatprep.subr.mxu0 0.0
    %523 = vmatpush1.msra.mxu0 0.0
    %524 = vmatprep.subr.mxu0 0.0
    %525 = vmatpush1.msra.mxu0 0.0
    %526 = vmatprep.subr.mxu0 0.0
    %527 = vmatpush1.msra.mxu0 0.0
    %528 = vmatprep.subr.mxu0 0.0
    %529 = vmatpush1.msra.mxu0 0.0
    %530 = vmatprep.subr.mxu0 0.0
    %531 = vmatpush1.msra.mxu0 0.0
    %532 = vmatprep.subr.mxu0 0.0
    %533 = vmatpush1.msra.mxu0 0.0
    %534 = vmatprep.mubr.f32.mxu0 0.0
    %v535 = vand.u32 %v28, 4294901760
    %536 = vmatmul.mubr.f32.gmra.mrb[0].mxu0 %v535
    %v537 = vpop.f32.mrb[0].mxu0
    %v538 = vadd.f32 %v433, %v537
    %v539 = vpop.f32.mrb[0].mxu0
    %v540 = vadd.f32 %v435, %v539
    %541 = vmatprep.mubr.f32.mxu0 0.0
    %v542 = vand.u32 %v31, 4294901760
    %543 = vmatmul.mubr.f32.gmra.mrb[0].mxu0 %v542
    %v544 = vpop.f32.mrb[0].mxu0
    %v545 = vadd.f32 %v442, %v544
    %v546 = vpop.f32.mrb[0].mxu0
    %v547 = vadd.f32 %v444, %v546
    %548 = vmatprep.mubr.f32.mxu0 0.0
    %v549 = vand.u32 %v34, 4294901760
    %550 = vmatmul.mubr.f32.gmra.mrb[0].mxu0 %v549
    %v551 = vpop.f32.mrb[0].mxu0
    %v552 = vadd.f32 %v451, %v551
    %v553 = vpop.f32.mrb[0].mxu0
    %v554 = vadd.f32 %v453, %v553
    %555 = vmatprep.mubr.f32.mxu0 0.0
    %v556 = vand.u32 %v37, 4294901760
    %557 = vmatmul.mubr.f32.gmra.mrb[0].mxu0 %v556
    %v558 = vpop.f32.mrb[0].mxu0
    %v559 = vadd.f32 %v460, %v558
    %v560 = vpop.f32.mrb[0].mxu0
    %v561 = vadd.f32 %v462, %v560
    %562 = vdwg.mxu0
    %v563 = vand.u32 %v44, 4294901760
    %564 = vmatprep.subr.mxu0 %v563
    %v565 = vand.u32 %v41, 4294901760
    %566 = vmatpush1.msra.mxu0 %v565
    %567 = vmatprep.subr.mxu0 0.0
    %568 = vmatpush1.msra.mxu0 0.0
    %569 = vmatprep.subr.mxu0 0.0
    %570 = vmatpush1.msra.mxu0 0.0
    %571 = vmatprep.subr.mxu0 0.0
    %572 = vmatpush1.msra.mxu0 0.0
    %573 = vmatprep.subr.mxu0 0.0
    %574 = vmatpush1.msra.mxu0 0.0
    %575 = vmatprep.subr.mxu0 0.0
    %576 = vmatpush1.msra.mxu0 0.0
    %577 = vmatprep.subr.mxu0 0.0
    %578 = vmatpush1.msra.mxu0 0.0
    %579 = vmatprep.subr.mxu0 0.0
    %580 = vmatpush1.msra.mxu0 0.0
    %581 = vmatprep.subr.mxu0 0.0
    %582 = vmatpush1.msra.mxu0 0.0
    %583 = vmatprep.subr.mxu0 0.0
    %584 = vmatpush1.msra.mxu0 0.0
    %585 = vmatprep.subr.mxu0 0.0
    %586 = vmatpush1.msra.mxu0 0.0
    %587 = vmatprep.subr.mxu0 0.0
    %588 = vmatpush1.msra.mxu0 0.0
    %589 = vmatprep.subr.mxu0 0.0
    %590 = vmatpush1.msra.mxu0 0.0
    %591 = vmatprep.subr.mxu0 0.0
    %592 = vmatpush1.msra.mxu0 0.0
    %593 = vmatprep.subr.mxu0 0.0
    %594 = vmatpush1.msra.mxu0 0.0
    %595 = vmatprep.subr.mxu0 0.0
    %596 = vmatpush1.msra.mxu0 0.0
    %597 = vmatprep.subr.mxu0 0.0
    %598 = vmatpush1.msra.mxu0 0.0
    %599 = vmatprep.subr.mxu0 0.0
    %600 = vmatpush1.msra.mxu0 0.0
    %601 = vmatprep.subr.mxu0 0.0
    %602 = vmatpush1.msra.mxu0 0.0
    %603 = vmatprep.subr.mxu0 0.0
    %604 = vmatpush1.msra.mxu0 0.0
    %605 = vmatprep.subr.mxu0 0.0
    %606 = vmatpush1.msra.mxu0 0.0
    %607 = vmatprep.subr.mxu0 0.0
    %608 = vmatpush1.msra.mxu0 0.0
    %609 = vmatprep.subr.mxu0 0.0
    %610 = vmatpush1.msra.mxu0 0.0
    %611 = vmatprep.subr.mxu0 0.0
    %612 = vmatpush1.msra.mxu0 0.0
    %613 = vmatprep.subr.mxu0 0.0
    %614 = vmatpush1.msra.mxu0 0.0
    %615 = vmatprep.subr.mxu0 0.0
    %616 = vmatpush1.msra.mxu0 0.0
    %617 = vmatprep.subr.mxu0 0.0
    %618 = vmatpush1.msra.mxu0 0.0
    %619 = vmatprep.subr.mxu0 0.0
    %620 = vmatpush1.msra.mxu0 0.0
    %621 = vmatprep.subr.mxu0 0.0
    %622 = vmatpush1.msra.mxu0 0.0
    %623 = vmatprep.subr.mxu0 0.0
    %624 = vmatpush1.msra.mxu0 0.0
    %625 = vmatprep.subr.mxu0 0.0
    %626 = vmatpush1.msra.mxu0 0.0
    %627 = vmatprep.subr.mxu0 0.0
    %628 = vmatpush1.msra.mxu0 0.0
    %629 = vmatprep.mubr.f32.mxu0 0.0
    %v630 = vand.u32 %v28, 4294901760
    %631 = vmatmul.mubr.f32.gmra.mrb[0].mxu0 %v630
    %v632 = vpop.f32.mrb[0].mxu0
    %v633 = vadd.f32 %v538, %v632
    %v634 = vpop.f32.mrb[0].mxu0
    %v635 = vadd.f32 %v540, %v634
    %636 = vmatprep.mubr.f32.mxu0 0.0
    %v637 = vand.u32 %v31, 4294901760
    %638 = vmatmul.mubr.f32.gmra.mrb[0].mxu0 %v637
    %v639 = vpop.f32.mrb[0].mxu0
    %v640 = vadd.f32 %v545, %v639
    %v641 = vpop.f32.mrb[0].mxu0
    %v642 = vadd.f32 %v547, %v641
    %643 = vmatprep.mubr.f32.mxu0 0.0
    %v644 = vand.u32 %v34, 4294901760
    %645 = vmatmul.mubr.f32.gmra.mrb[0].mxu0 %v644
    %v646 = vpop.f32.mrb[0].mxu0
    %v647 = vadd.f32 %v552, %v646
    %v648 = vpop.f32.mrb[0].mxu0
    %v649 = vadd.f32 %v554, %v648
    %650 = vmatprep.mubr.f32.mxu0 0.0
    %v651 = vand.u32 %v37, 4294901760
    %652 = vmatmul.mubr.f32.gmra.mrb[0].mxu0 %v651
    %v653 = vpop.f32.mrb[0].mxu0
    %v654 = vadd.f32 %v559, %v653
    %v655 = vpop.f32.mrb[0].mxu0
    %v656 = vadd.f32 %v561, %v655
    %657 = vdwg.mxu0
    %v658 = vmax.f32 %v633, 0.0
    %v659 = vmax.f32 %v635, 0.0
    %v660 = vmax.f32 %v640, 0.0
    %v661 = vmax.f32 %v642, 0.0
    %v662 = vmax.f32 %v647, 0.0
    %v663 = vmax.f32 %v649, 0.0
    %v664 = vmax.f32 %v654, 0.0
    %v665 = vmax.f32 %v656, 0.0
    %v666 = vmul.f32 %v658, %v658
    %v667 = vmul.f32 %v659, %v659
    %v668 = vmul.f32 %v660, %v660
    %v669 = vmul.f32 %v661, %v661
    %v670 = vmul.f32 %v662, %v662
    %v671 = vmul.f32 %v663, %v663
    %v672 = vmul.f32 %v664, %v664
    %v673 = vmul.f32 %v665, %v665
    %675 = vset.pattern.permute.xlu0 0
    %676 = vperm.xlu0 %675, %v23
    %v677 = vpop.permute.xlu0 %676
    %vm679 = vcmask 261120
    %v681 = vsel %vm679, %v22, 0
    %v683 = vand.u32 %v667, 4294901760
    %684 = vmatprep.subr.mxu0 %v683
    %v685 = vand.u32 %v666, 4294901760
    %686 = vmatpush1.msra.mxu0 %v685
    %v687 = vand.u32 %v669, 4294901760
    %688 = vmatprep.subr.mxu0 %v687
    %v689 = vand.u32 %v668, 4294901760
    %690 = vmatpush1.msra.mxu0 %v689
    %v691 = vand.u32 %v671, 4294901760
    %692 = vmatprep.subr.mxu0 %v691
    %v693 = vand.u32 %v670, 4294901760
    %694 = vmatpush1.msra.mxu0 %v693
    %v695 = vand.u32 %v673, 4294901760
    %696 = vmatprep.subr.mxu0 %v695
    %v697 = vand.u32 %v672, 4294901760
    %698 = vmatpush1.msra.mxu0 %v697
    %699 = vmatprep.subr.mxu0 0.0
    %700 = vmatpush1.msra.mxu0 0.0
    %701 = vmatprep.subr.mxu0 0.0
    %702 = vmatpush1.msra.mxu0 0.0
    %703 = vmatprep.subr.mxu0 0.0
    %704 = vmatpush1.msra.mxu0 0.0
    %705 = vmatprep.subr.mxu0 0.0
    %706 = vmatpush1.msra.mxu0 0.0
    %707 = vmatprep.subr.mxu0 0.0
    %708 = vmatpush1.msra.mxu0 0.0
    %709 = vmatprep.subr.mxu0 0.0
    %710 = vmatpush1.msra.mxu0 0.0
    %711 = vmatprep.subr.mxu0 0.0
    %712 = vmatpush1.msra.mxu0 0.0
    %713 = vmatprep.subr.mxu0 0.0
    %714 = vmatpush1.msra.mxu0 0.0
    %715 = vmatprep.subr.mxu0 0.0
    %716 = vmatpush1.msra.mxu0 0.0
    %717 = vmatprep.subr.mxu0 0.0
    %718 = vmatpush1.msra.mxu0 0.0
    %719 = vmatprep.subr.mxu0 0.0
    %720 = vmatpush1.msra.mxu0 0.0
    %721 = vmatprep.subr.mxu0 0.0
    %722 = vmatpush1.msra.mxu0 0.0
    %723 = vmatprep.subr.mxu0 0.0
    %724 = vmatpush1.msra.mxu0 0.0
    %725 = vmatprep.subr.mxu0 0.0
    %726 = vmatpush1.msra.mxu0 0.0
    %727 = vmatprep.subr.mxu0 0.0
    %728 = vmatpush1.msra.mxu0 0.0
    %729 = vmatprep.subr.mxu0 0.0
    %730 = vmatpush1.msra.mxu0 0.0
    %731 = vmatprep.subr.mxu0 0.0
    %732 = vmatpush1.msra.mxu0 0.0
    %733 = vmatprep.subr.mxu0 0.0
    %734 = vmatpush1.msra.mxu0 0.0
    %735 = vmatprep.subr.mxu0 0.0
    %736 = vmatpush1.msra.mxu0 0.0
    %737 = vmatprep.subr.mxu0 0.0
    %738 = vmatpush1.msra.mxu0 0.0
    %739 = vmatprep.subr.mxu0 0.0
    %740 = vmatpush1.msra.mxu0 0.0
    %741 = vmatprep.subr.mxu0 0.0
    %742 = vmatpush1.msra.mxu0 0.0
    %743 = vmatprep.subr.mxu0 0.0
    %744 = vmatpush1.msra.mxu0 0.0
    %745 = vmatprep.subr.mxu0 0.0
    %746 = vmatpush1.msra.mxu0 0.0
    %747 = vmatprep.subr.mxu0 0.0
    %748 = vmatpush1.msra.mxu0 0.0
    %749 = vmatprep.subr.mxu0 0.0
    %750 = vmatpush1.msra.mxu0 0.0
    %751 = vmatprep.subr.mxu0 0.0
    %752 = vmatpush1.msra.mxu0 0.0
    %753 = vmatprep.subr.mxu0 0.0
    %754 = vmatpush1.msra.mxu0 0.0
    %755 = vmatprep.mubr.f32.mxu0 0.0
    %v756 = vand.u32 %v681, 4294901760
    %v757 = vsub.f32 %v681, %v756
    %v758 = vand.u32 %v757, 4294901760
    %v759 = vsub.f32 %v757, %v758
    %v760 = vand.u32 %v759, 4294901760
    %761 = vmatmul.mubr.f32.gmra.mrb[0].mxu0 %v760
    %v762 = vpop.f32.mrb[0].mxu0
    %v763 = vadd.f32 %v677, %v762
    %v764 = vpop.f32.mrb[0].mxu0
    %v765 = vadd.f32 %v677, %v764
    %766 = vdwg.mxu0
    %v767 = vand.u32 %v667, 4294901760
    %v768 = vsub.f32 %v667, %v767
    %v769 = vand.u32 %v768, 4294901760
    %v770 = vsub.f32 %v768, %v769
    %v771 = vand.u32 %v770, 4294901760
    %772 = vmatprep.subr.mxu0 %v771
    %v773 = vand.u32 %v666, 4294901760
    %v774 = vsub.f32 %v666, %v773
    %v775 = vand.u32 %v774, 4294901760
    %v776 = vsub.f32 %v774, %v775
    %v777 = vand.u32 %v776, 4294901760
    %778 = vmatpush1.msra.mxu0 %v777
    %v779 = vand.u32 %v669, 4294901760
    %v780 = vsub.f32 %v669, %v779
    %v781 = vand.u32 %v780, 4294901760
    %v782 = vsub.f32 %v780, %v781
    %v783 = vand.u32 %v782, 4294901760
    %784 = vmatprep.subr.mxu0 %v783
    %v785 = vand.u32 %v668, 4294901760
    %v786 = vsub.f32 %v668, %v785
    %v787 = vand.u32 %v786, 4294901760
    %v788 = vsub.f32 %v786, %v787
    %v789 = vand.u32 %v788, 4294901760
    %790 = vmatpush1.msra.mxu0 %v789
    %v791 = vand.u32 %v671, 4294901760
    %v792 = vsub.f32 %v671, %v791
    %v793 = vand.u32 %v792, 4294901760
    %v794 = vsub.f32 %v792, %v793
    %v795 = vand.u32 %v794, 4294901760
    %796 = vmatprep.subr.mxu0 %v795
    %v797 = vand.u32 %v670, 4294901760
    %v798 = vsub.f32 %v670, %v797
    %v799 = vand.u32 %v798, 4294901760
    %v800 = vsub.f32 %v798, %v799
    %v801 = vand.u32 %v800, 4294901760
    %802 = vmatpush1.msra.mxu0 %v801
    %v803 = vand.u32 %v673, 4294901760
    %v804 = vsub.f32 %v673, %v803
    %v805 = vand.u32 %v804, 4294901760
    %v806 = vsub.f32 %v804, %v805
    %v807 = vand.u32 %v806, 4294901760
    %808 = vmatprep.subr.mxu0 %v807
    %v809 = vand.u32 %v672, 4294901760
    %v810 = vsub.f32 %v672, %v809
    %v811 = vand.u32 %v810, 4294901760
    %v812 = vsub.f32 %v810, %v811
    %v813 = vand.u32 %v812, 4294901760
    %814 = vmatpush1.msra.mxu0 %v813
    %815 = vmatprep.subr.mxu0 0.0
    %816 = vmatpush1.msra.mxu0 0.0
    %817 = vmatprep.subr.mxu0 0.0
    %818 = vmatpush1.msra.mxu0 0.0
    %819 = vmatprep.subr.mxu0 0.0
    %820 = vmatpush1.msra.mxu0 0.0
    %821 = vmatprep.subr.mxu0 0.0
    %822 = vmatpush1.msra.mxu0 0.0
    %823 = vmatprep.subr.mxu0 0.0
    %824 = vmatpush1.msra.mxu0 0.0
    %825 = vmatprep.subr.mxu0 0.0
    %826 = vmatpush1.msra.mxu0 0.0
    %827 = vmatprep.subr.mxu0 0.0
    %828 = vmatpush1.msra.mxu0 0.0
    %829 = vmatprep.subr.mxu0 0.0
    %830 = vmatpush1.msra.mxu0 0.0
    %831 = vmatprep.subr.mxu0 0.0
    %832 = vmatpush1.msra.mxu0 0.0
    %833 = vmatprep.subr.mxu0 0.0
    %834 = vmatpush1.msra.mxu0 0.0
    %835 = vmatprep.subr.mxu0 0.0
    %836 = vmatpush1.msra.mxu0 0.0
    %837 = vmatprep.subr.mxu0 0.0
    %838 = vmatpush1.msra.mxu0 0.0
    %839 = vmatprep.subr.mxu0 0.0
    %840 = vmatpush1.msra.mxu0 0.0
    %841 = vmatprep.subr.mxu0 0.0
    %842 = vmatpush1.msra.mxu0 0.0
    %843 = vmatprep.subr.mxu0 0.0
    %844 = vmatpush1.msra.mxu0 0.0
    %845 = vmatprep.subr.mxu0 0.0
    %846 = vmatpush1.msra.mxu0 0.0
    %847 = vmatprep.subr.mxu0 0.0
    %848 = vmatpush1.msra.mxu0 0.0
    %849 = vmatprep.subr.mxu0 0.0
    %850 = vmatpush1.msra.mxu0 0.0
    %851 = vmatprep.subr.mxu0 0.0
    %852 = vmatpush1.msra.mxu0 0.0
    %853 = vmatprep.subr.mxu0 0.0
    %854 = vmatpush1.msra.mxu0 0.0
    %855 = vmatprep.subr.mxu0 0.0
    %856 = vmatpush1.msra.mxu0 0.0
    %857 = vmatprep.subr.mxu0 0.0
    %858 = vmatpush1.msra.mxu0 0.0
    %859 = vmatprep.subr.mxu0 0.0
    %860 = vmatpush1.msra.mxu0 0.0
    %861 = vmatprep.subr.mxu0 0.0
    %862 = vmatpush1.msra.mxu0 0.0
    %863 = vmatprep.subr.mxu0 0.0
    %864 = vmatpush1.msra.mxu0 0.0
    %865 = vmatprep.subr.mxu0 0.0
    %866 = vmatpush1.msra.mxu0 0.0
    %867 = vmatprep.subr.mxu0 0.0
    %868 = vmatpush1.msra.mxu0 0.0
    %869 = vmatprep.subr.mxu0 0.0
    %870 = vmatpush1.msra.mxu0 0.0
    %871 = vmatprep.mubr.f32.mxu0 0.0
    %v872 = vand.u32 %v681, 4294901760
    %873 = vmatmul.mubr.f32.gmra.mrb[0].mxu0 %v872
    %v874 = vpop.f32.mrb[0].mxu0
    %v875 = vadd.f32 %v763, %v874
    %v876 = vpop.f32.mrb[0].mxu0
    %v877 = vadd.f32 %v765, %v876
    %878 = vdwg.mxu0
    %v879 = vand.u32 %v667, 4294901760
    %v880 = vsub.f32 %v667, %v879
    %881 = vmatprep.subr.mxu0 %v880
    %v882 = vand.u32 %v666, 4294901760
    %v883 = vsub.f32 %v666, %v882
    %884 = vmatpush1.msra.mxu0 %v883
    %v885 = vand.u32 %v669, 4294901760
    %v886 = vsub.f32 %v669, %v885
    %887 = vmatprep.subr.mxu0 %v886
    %v888 = vand.u32 %v668, 4294901760
    %v889 = vsub.f32 %v668, %v888
    %890 = vmatpush1.msra.mxu0 %v889
    %v891 = vand.u32 %v671, 4294901760
    %v892 = vsub.f32 %v671, %v891
    %893 = vmatprep.subr.mxu0 %v892
    %v894 = vand.u32 %v670, 4294901760
    %v895 = vsub.f32 %v670, %v894
    %896 = vmatpush1.msra.mxu0 %v895
    %v897 = vand.u32 %v673, 4294901760
    %v898 = vsub.f32 %v673, %v897
    %899 = vmatprep.subr.mxu0 %v898
    %v900 = vand.u32 %v672, 4294901760
    %v901 = vsub.f32 %v672, %v900
    %902 = vmatpush1.msra.mxu0 %v901
    %903 = vmatprep.subr.mxu0 0.0
    %904 = vmatpush1.msra.mxu0 0.0
    %905 = vmatprep.subr.mxu0 0.0
    %906 = vmatpush1.msra.mxu0 0.0
    %907 = vmatprep.subr.mxu0 0.0
    %908 = vmatpush1.msra.mxu0 0.0
    %909 = vmatprep.subr.mxu0 0.0
    %910 = vmatpush1.msra.mxu0 0.0
    %911 = vmatprep.subr.mxu0 0.0
    %912 = vmatpush1.msra.mxu0 0.0
    %913 = vmatprep.subr.mxu0 0.0
    %914 = vmatpush1.msra.mxu0 0.0
    %915 = vmatprep.subr.mxu0 0.0
    %916 = vmatpush1.msra.mxu0 0.0
    %917 = vmatprep.subr.mxu0 0.0
    %918 = vmatpush1.msra.mxu0 0.0
    %919 = vmatprep.subr.mxu0 0.0
    %920 = vmatpush1.msra.mxu0 0.0
    %921 = vmatprep.subr.mxu0 0.0
    %922 = vmatpush1.msra.mxu0 0.0
    %923 = vmatprep.subr.mxu0 0.0
    %924 = vmatpush1.msra.mxu0 0.0
    %925 = vmatprep.subr.mxu0 0.0
    %926 = vmatpush1.msra.mxu0 0.0
    %927 = vmatprep.subr.mxu0 0.0
    %928 = vmatpush1.msra.mxu0 0.0
    %929 = vmatprep.subr.mxu0 0.0
    %930 = vmatpush1.msra.mxu0 0.0
    %931 = vmatprep.subr.mxu0 0.0
    %932 = vmatpush1.msra.mxu0 0.0
    %933 = vmatprep.subr.mxu0 0.0
    %934 = vmatpush1.msra.mxu0 0.0
    %935 = vmatprep.subr.mxu0 0.0
    %936 = vmatpush1.msra.mxu0 0.0
    %937 = vmatprep.subr.mxu0 0.0
    %938 = vmatpush1.msra.mxu0 0.0
    %939 = vmatprep.subr.mxu0 0.0
    %940 = vmatpush1.msra.mxu0 0.0
    %941 = vmatprep.subr.mxu0 0.0
    %942 = vmatpush1.msra.mxu0 0.0
    %943 = vmatprep.subr.mxu0 0.0
    %944 = vmatpush1.msra.mxu0 0.0
    %945 = vmatprep.subr.mxu0 0.0
    %946 = vmatpush1.msra.mxu0 0.0
    %947 = vmatprep.subr.mxu0 0.0
    %948 = vmatpush1.msra.mxu0 0.0
    %949 = vmatprep.subr.mxu0 0.0
    %950 = vmatpush1.msra.mxu0 0.0
    %951 = vmatprep.subr.mxu0 0.0
    %952 = vmatpush1.msra.mxu0 0.0
    %953 = vmatprep.subr.mxu0 0.0
    %954 = vmatpush1.msra.mxu0 0.0
    %955 = vmatprep.subr.mxu0 0.0
    %956 = vmatpush1.msra.mxu0 0.0
    %957 = vmatprep.subr.mxu0 0.0
    %958 = vmatpush1.msra.mxu0 0.0
    %959 = vmatprep.mubr.f32.mxu0 0.0
    %v960 = vand.u32 %v681, 4294901760
    %v961 = vsub.f32 %v681, %v960
    %962 = vmatmul.mubr.f32.gmra.mrb[0].mxu0 %v961
    %v963 = vpop.f32.mrb[0].mxu0
    %v964 = vadd.f32 %v875, %v963
    %v965 = vpop.f32.mrb[0].mxu0
    %v966 = vadd.f32 %v877, %v965
    %967 = vdwg.mxu0
    %v968 = vand.u32 %v667, 4294901760
    %969 = vmatprep.subr.mxu0 %v968
    %v970 = vand.u32 %v666, 4294901760
    %971 = vmatpush1.msra.mxu0 %v970
    %v972 = vand.u32 %v669, 4294901760
    %973 = vmatprep.subr.mxu0 %v972
    %v974 = vand.u32 %v668, 4294901760
    %975 = vmatpush1.msra.mxu0 %v974
    %v976 = vand.u32 %v671, 4294901760
    %977 = vmatprep.subr.mxu0 %v976
    %v978 = vand.u32 %v670, 4294901760
    %979 = vmatpush1.msra.mxu0 %v978
    %v980 = vand.u32 %v673, 4294901760
    %981 = vmatprep.subr.mxu0 %v980
    %v982 = vand.u32 %v672, 4294901760
    %983 = vmatpush1.msra.mxu0 %v982
    %984 = vmatprep.subr.mxu0 0.0
    %985 = vmatpush1.msra.mxu0 0.0
    %986 = vmatprep.subr.mxu0 0.0
    %987 = vmatpush1.msra.mxu0 0.0
    %988 = vmatprep.subr.mxu0 0.0
    %989 = vmatpush1.msra.mxu0 0.0
    %990 = vmatprep.subr.mxu0 0.0
    %991 = vmatpush1.msra.mxu0 0.0
    %992 = vmatprep.subr.mxu0 0.0
    %993 = vmatpush1.msra.mxu0 0.0
    %994 = vmatprep.subr.mxu0 0.0
    %995 = vmatpush1.msra.mxu0 0.0
    %996 = vmatprep.subr.mxu0 0.0
    %997 = vmatpush1.msra.mxu0 0.0
    %998 = vmatprep.subr.mxu0 0.0
    %999 = vmatpush1.msra.mxu0 0.0
    %1000 = vmatprep.subr.mxu0 0.0
    %1001 = vmatpush1.msra.mxu0 0.0
    %1002 = vmatprep.subr.mxu0 0.0
    %1003 = vmatpush1.msra.mxu0 0.0
    %1004 = vmatprep.subr.mxu0 0.0
    %1005 = vmatpush1.msra.mxu0 0.0
    %1006 = vmatprep.subr.mxu0 0.0
    %1007 = vmatpush1.msra.mxu0 0.0
    %1008 = vmatprep.subr.mxu0 0.0
    %1009 = vmatpush1.msra.mxu0 0.0
    %1010 = vmatprep.subr.mxu0 0.0
    %1011 = vmatpush1.msra.mxu0 0.0
    %1012 = vmatprep.subr.mxu0 0.0
    %1013 = vmatpush1.msra.mxu0 0.0
    %1014 = vmatprep.subr.mxu0 0.0
    %1015 = vmatpush1.msra.mxu0 0.0
    %1016 = vmatprep.subr.mxu0 0.0
    %1017 = vmatpush1.msra.mxu0 0.0
    %1018 = vmatprep.subr.mxu0 0.0
    %1019 = vmatpush1.msra.mxu0 0.0
    %1020 = vmatprep.subr.mxu0 0.0
    %1021 = vmatpush1.msra.mxu0 0.0
    %1022 = vmatprep.subr.mxu0 0.0
    %1023 = vmatpush1.msra.mxu0 0.0
    %1024 = vmatprep.subr.mxu0 0.0
    %1025 = vmatpush1.msra.mxu0 0.0
    %1026 = vmatprep.subr.mxu0 0.0
    %1027 = vmatpush1.msra.mxu0 0.0
    %1028 = vmatprep.subr.mxu0 0.0
    %1029 = vmatpush1.msra.mxu0 0.0
    %1030 = vmatprep.subr.mxu0 0.0
    %1031 = vmatpush1.msra.mxu0 0.0
    %1032 = vmatprep.subr.mxu0 0.0
    %1033 = vmatpush1.msra.mxu0 0.0
    %1034 = vmatprep.subr.mxu0 0.0
    %1035 = vmatpush1.msra.mxu0 0.0
    %1036 = vmatprep.subr.mxu0 0.0
    %1037 = vmatpush1.msra.mxu0 0.0
    %1038 = vmatprep.subr.mxu0 0.0
    %1039 = vmatpush1.msra.mxu0 0.0
    %1040 = vmatprep.mubr.f32.mxu0 0.0
    %v1041 = vand.u32 %v681, 4294901760
    %v1042 = vsub.f32 %v681, %v1041
    %v1043 = vand.u32 %v1042, 4294901760
    %1044 = vmatmul.mubr.f32.gmra.mrb[0].mxu0 %v1043
    %v1045 = vpop.f32.mrb[0].mxu0
    %v1046 = vadd.f32 %v964, %v1045
    %v1047 = vpop.f32.mrb[0].mxu0
    %v1048 = vadd.f32 %v966, %v1047
    %1049 = vdwg.mxu0
    %v1050 = vand.u32 %v667, 4294901760
    %v1051 = vsub.f32 %v667, %v1050
    %v1052 = vand.u32 %v1051, 4294901760
    %1053 = vmatprep.subr.mxu0 %v1052
    %v1054 = vand.u32 %v666, 4294901760
    %v1055 = vsub.f32 %v666, %v1054
    %v1056 = vand.u32 %v1055, 4294901760
    %1057 = vmatpush1.msra.mxu0 %v1056
    %v1058 = vand.u32 %v669, 4294901760
    %v1059 = vsub.f32 %v669, %v1058
    %v1060 = vand.u32 %v1059, 4294901760
    %1061 = vmatprep.subr.mxu0 %v1060
    %v1062 = vand.u32 %v668, 4294901760
    %v1063 = vsub.f32 %v668, %v1062
    %v1064 = vand.u32 %v1063, 4294901760
    %1065 = vmatpush1.msra.mxu0 %v1064
    %v1066 = vand.u32 %v671, 4294901760
    %v1067 = vsub.f32 %v671, %v1066
    %v1068 = vand.u32 %v1067, 4294901760
    %1069 = vmatprep.subr.mxu0 %v1068
    %v1070 = vand.u32 %v670, 4294901760
    %v1071 = vsub.f32 %v670, %v1070
    %v1072 = vand.u32 %v1071, 4294901760
    %1073 = vmatpush1.msra.mxu0 %v1072
    %v1074 = vand.u32 %v673, 4294901760
    %v1075 = vsub.f32 %v673, %v1074
    %v1076 = vand.u32 %v1075, 4294901760
    %1077 = vmatprep.subr.mxu0 %v1076
    %v1078 = vand.u32 %v672, 4294901760
    %v1079 = vsub.f32 %v672, %v1078
    %v1080 = vand.u32 %v1079, 4294901760
    %1081 = vmatpush1.msra.mxu0 %v1080
    %1082 = vmatprep.subr.mxu0 0.0
    %1083 = vmatpush1.msra.mxu0 0.0
    %1084 = vmatprep.subr.mxu0 0.0
    %1085 = vmatpush1.msra.mxu0 0.0
    %1086 = vmatprep.subr.mxu0 0.0
    %1087 = vmatpush1.msra.mxu0 0.0
    %1088 = vmatprep.subr.mxu0 0.0
    %1089 = vmatpush1.msra.mxu0 0.0
    %1090 = vmatprep.subr.mxu0 0.0
    %1091 = vmatpush1.msra.mxu0 0.0
    %1092 = vmatprep.subr.mxu0 0.0
    %1093 = vmatpush1.msra.mxu0 0.0
    %1094 = vmatprep.subr.mxu0 0.0
    %1095 = vmatpush1.msra.mxu0 0.0
    %1096 = vmatprep.subr.mxu0 0.0
    %1097 = vmatpush1.msra.mxu0 0.0
    %1098 = vmatprep.subr.mxu0 0.0
    %1099 = vmatpush1.msra.mxu0 0.0
    %1100 = vmatprep.subr.mxu0 0.0
    %1101 = vmatpush1.msra.mxu0 0.0
    %1102 = vmatprep.subr.mxu0 0.0
    %1103 = vmatpush1.msra.mxu0 0.0
    %1104 = vmatprep.subr.mxu0 0.0
    %1105 = vmatpush1.msra.mxu0 0.0
    %1106 = vmatprep.subr.mxu0 0.0
    %1107 = vmatpush1.msra.mxu0 0.0
    %1108 = vmatprep.subr.mxu0 0.0
    %1109 = vmatpush1.msra.mxu0 0.0
    %1110 = vmatprep.subr.mxu0 0.0
    %1111 = vmatpush1.msra.mxu0 0.0
    %1112 = vmatprep.subr.mxu0 0.0
    %1113 = vmatpush1.msra.mxu0 0.0
    %1114 = vmatprep.subr.mxu0 0.0
    %1115 = vmatpush1.msra.mxu0 0.0
    %1116 = vmatprep.subr.mxu0 0.0
    %1117 = vmatpush1.msra.mxu0 0.0
    %1118 = vmatprep.subr.mxu0 0.0
    %1119 = vmatpush1.msra.mxu0 0.0
    %1120 = vmatprep.subr.mxu0 0.0
    %1121 = vmatpush1.msra.mxu0 0.0
    %1122 = vmatprep.subr.mxu0 0.0
    %1123 = vmatpush1.msra.mxu0 0.0
    %1124 = vmatprep.subr.mxu0 0.0
    %1125 = vmatpush1.msra.mxu0 0.0
    %1126 = vmatprep.subr.mxu0 0.0
    %1127 = vmatpush1.msra.mxu0 0.0
    %1128 = vmatprep.subr.mxu0 0.0
    %1129 = vmatpush1.msra.mxu0 0.0
    %1130 = vmatprep.subr.mxu0 0.0
    %1131 = vmatpush1.msra.mxu0 0.0
    %1132 = vmatprep.subr.mxu0 0.0
    %1133 = vmatpush1.msra.mxu0 0.0
    %1134 = vmatprep.subr.mxu0 0.0
    %1135 = vmatpush1.msra.mxu0 0.0
    %1136 = vmatprep.subr.mxu0 0.0
    %1137 = vmatpush1.msra.mxu0 0.0
    %1138 = vmatprep.mubr.f32.mxu0 0.0
    %v1139 = vand.u32 %v681, 4294901760
    %1140 = vmatmul.mubr.f32.gmra.mrb[0].mxu0 %v1139
    %v1141 = vpop.f32.mrb[0].mxu0
    %v1142 = vadd.f32 %v1046, %v1141
    %v1143 = vpop.f32.mrb[0].mxu0
    %v1144 = vadd.f32 %v1048, %v1143
    %1145 = vdwg.mxu0
    %v1146 = vand.u32 %v667, 4294901760
    %1147 = vmatprep.subr.mxu0 %v1146
    %v1148 = vand.u32 %v666, 4294901760
    %1149 = vmatpush1.msra.mxu0 %v1148
    %v1150 = vand.u32 %v669, 4294901760
    %1151 = vmatprep.subr.mxu0 %v1150
    %v1152 = vand.u32 %v668, 4294901760
    %1153 = vmatpush1.msra.mxu0 %v1152
    %v1154 = vand.u32 %v671, 4294901760
    %1155 = vmatprep.subr.mxu0 %v1154
    %v1156 = vand.u32 %v670, 4294901760
    %1157 = vmatpush1.msra.mxu0 %v1156
    %v1158 = vand.u32 %v673, 4294901760
    %1159 = vmatprep.subr.mxu0 %v1158
    %v1160 = vand.u32 %v672, 4294901760
    %1161 = vmatpush1.msra.mxu0 %v1160
    %1162 = vmatprep.subr.mxu0 0.0
    %1163 = vmatpush1.msra.mxu0 0.0
    %1164 = vmatprep.subr.mxu0 0.0
    %1165 = vmatpush1.msra.mxu0 0.0
    %1166 = vmatprep.subr.mxu0 0.0
    %1167 = vmatpush1.msra.mxu0 0.0
    %1168 = vmatprep.subr.mxu0 0.0
    %1169 = vmatpush1.msra.mxu0 0.0
    %1170 = vmatprep.subr.mxu0 0.0
    %1171 = vmatpush1.msra.mxu0 0.0
    %1172 = vmatprep.subr.mxu0 0.0
    %1173 = vmatpush1.msra.mxu0 0.0
    %1174 = vmatprep.subr.mxu0 0.0
    %1175 = vmatpush1.msra.mxu0 0.0
    %1176 = vmatprep.subr.mxu0 0.0
    %1177 = vmatpush1.msra.mxu0 0.0
    %1178 = vmatprep.subr.mxu0 0.0
    %1179 = vmatpush1.msra.mxu0 0.0
    %1180 = vmatprep.subr.mxu0 0.0
    %1181 = vmatpush1.msra.mxu0 0.0
    %1182 = vmatprep.subr.mxu0 0.0
    %1183 = vmatpush1.msra.mxu0 0.0
    %1184 = vmatprep.subr.mxu0 0.0
    %1185 = vmatpush1.msra.mxu0 0.0
    %1186 = vmatprep.subr.mxu0 0.0
    %1187 = vmatpush1.msra.mxu0 0.0
    %1188 = vmatprep.subr.mxu0 0.0
    %1189 = vmatpush1.msra.mxu0 0.0
    %1190 = vmatprep.subr.mxu0 0.0
    %1191 = vmatpush1.msra.mxu0 0.0
    %1192 = vmatprep.subr.mxu0 0.0
    %1193 = vmatpush1.msra.mxu0 0.0
    %1194 = vmatprep.subr.mxu0 0.0
    %1195 = vmatpush1.msra.mxu0 0.0
    %1196 = vmatprep.subr.mxu0 0.0
    %1197 = vmatpush1.msra.mxu0 0.0
    %1198 = vmatprep.subr.mxu0 0.0
    %1199 = vmatpush1.msra.mxu0 0.0
    %1200 = vmatprep.subr.mxu0 0.0
    %1201 = vmatpush1.msra.mxu0 0.0
    %1202 = vmatprep.subr.mxu0 0.0
    %1203 = vmatpush1.msra.mxu0 0.0
    %1204 = vmatprep.subr.mxu0 0.0
    %1205 = vmatpush1.msra.mxu0 0.0
    %1206 = vmatprep.subr.mxu0 0.0
    %1207 = vmatpush1.msra.mxu0 0.0
    %1208 = vmatprep.subr.mxu0 0.0
    %1209 = vmatpush1.msra.mxu0 0.0
    %1210 = vmatprep.subr.mxu0 0.0
    %1211 = vmatpush1.msra.mxu0 0.0
    %1212 = vmatprep.subr.mxu0 0.0
    %1213 = vmatpush1.msra.mxu0 0.0
    %1214 = vmatprep.subr.mxu0 0.0
    %1215 = vmatpush1.msra.mxu0 0.0
    %1216 = vmatprep.subr.mxu0 0.0
    %1217 = vmatpush1.msra.mxu0 0.0
    %1218 = vmatprep.mubr.f32.mxu0 0.0
    %v1219 = vand.u32 %v681, 4294901760
    %1220 = vmatmul.mubr.f32.gmra.mrb[0].mxu0 %v1219
    %v1221 = vpop.f32.mrb[0].mxu0
    %v1222 = vadd.f32 %v1142, %v1221
    %v1223 = vpop.f32.mrb[0].mxu0
    %v1224 = vadd.f32 %v1144, %v1223
    %1225 = vdwg.mxu0
    %v1226 = vld [vmem:[%s0] sm:$0xf0]
    %v1227 = vld [vmem:[%s0 + $0x8] sm:$0xf0]
    %v1230 = vrot.slane %v1226, 4
    %v1231 = vrot.slane %v1227, 4
    %v1232 = vsel %vm39, %v1230, 0
    %v1234 = vsel %vm39, %v1231, 0
    %v1236 = vand.u32 %v1234, 4294901760
    %1237 = vmatprep.subr.mxu0 %v1236
    %v1238 = vand.u32 %v1232, 4294901760
    %1239 = vmatpush1.msra.mxu0 %v1238
    %1240 = vmatprep.subr.mxu0 0.0
    %1241 = vmatpush1.msra.mxu0 0.0
    %1242 = vmatprep.subr.mxu0 0.0
    %1243 = vmatpush1.msra.mxu0 0.0
    %1244 = vmatprep.subr.mxu0 0.0
    %1245 = vmatpush1.msra.mxu0 0.0
    %1246 = vmatprep.subr.mxu0 0.0
    %1247 = vmatpush1.msra.mxu0 0.0
    %1248 = vmatprep.subr.mxu0 0.0
    %1249 = vmatpush1.msra.mxu0 0.0
    %1250 = vmatprep.subr.mxu0 0.0
    %1251 = vmatpush1.msra.mxu0 0.0
    %1252 = vmatprep.subr.mxu0 0.0
    %1253 = vmatpush1.msra.mxu0 0.0
    %1254 = vmatprep.subr.mxu0 0.0
    %1255 = vmatpush1.msra.mxu0 0.0
    %1256 = vmatprep.subr.mxu0 0.0
    %1257 = vmatpush1.msra.mxu0 0.0
    %1258 = vmatprep.subr.mxu0 0.0
    %1259 = vmatpush1.msra.mxu0 0.0
    %1260 = vmatprep.subr.mxu0 0.0
    %1261 = vmatpush1.msra.mxu0 0.0
    %1262 = vmatprep.subr.mxu0 0.0
    %1263 = vmatpush1.msra.mxu0 0.0
    %1264 = vmatprep.subr.mxu0 0.0
    %1265 = vmatpush1.msra.mxu0 0.0
    %1266 = vmatprep.subr.mxu0 0.0
    %1267 = vmatpush1.msra.mxu0 0.0
    %1268 = vmatprep.subr.mxu0 0.0
    %1269 = vmatpush1.msra.mxu0 0.0
    %1270 = vmatprep.subr.mxu0 0.0
    %1271 = vmatpush1.msra.mxu0 0.0
    %1272 = vmatprep.subr.mxu0 0.0
    %1273 = vmatpush1.msra.mxu0 0.0
    %1274 = vmatprep.subr.mxu0 0.0
    %1275 = vmatpush1.msra.mxu0 0.0
    %1276 = vmatprep.subr.mxu0 0.0
    %1277 = vmatpush1.msra.mxu0 0.0
    %1278 = vmatprep.subr.mxu0 0.0
    %1279 = vmatpush1.msra.mxu0 0.0
    %1280 = vmatprep.subr.mxu0 0.0
    %1281 = vmatpush1.msra.mxu0 0.0
    %1282 = vmatprep.subr.mxu0 0.0
    %1283 = vmatpush1.msra.mxu0 0.0
    %1284 = vmatprep.subr.mxu0 0.0
    %1285 = vmatpush1.msra.mxu0 0.0
    %1286 = vmatprep.subr.mxu0 0.0
    %1287 = vmatpush1.msra.mxu0 0.0
    %1288 = vmatprep.subr.mxu0 0.0
    %1289 = vmatpush1.msra.mxu0 0.0
    %1290 = vmatprep.subr.mxu0 0.0
    %1291 = vmatpush1.msra.mxu0 0.0
    %1292 = vmatprep.subr.mxu0 0.0
    %1293 = vmatpush1.msra.mxu0 0.0
    %1294 = vmatprep.subr.mxu0 0.0
    %1295 = vmatpush1.msra.mxu0 0.0
    %1296 = vmatprep.subr.mxu0 0.0
    %1297 = vmatpush1.msra.mxu0 0.0
    %1298 = vmatprep.subr.mxu0 0.0
    %1299 = vmatpush1.msra.mxu0 0.0
    %1300 = vmatprep.subr.mxu0 0.0
    %1301 = vmatpush1.msra.mxu0 0.0
    %1302 = vmatprep.mubr.f32.mxu0 0.0
    %v1303 = vand.u32 %v28, 4294901760
    %v1304 = vsub.f32 %v28, %v1303
    %v1305 = vand.u32 %v1304, 4294901760
    %v1306 = vsub.f32 %v1304, %v1305
    %v1307 = vand.u32 %v1306, 4294901760
    %1308 = vmatmul.mubr.f32.gmra.mrb[0].mxu0 %v1307
    %v1309 = vpop.f32.mrb[0].mxu0
    %v1310 = vadd.f32 0.0, %v1309
    %v1311 = vpop.f32.mrb[0].mxu0
    %v1312 = vadd.f32 0.0, %v1311
    %1313 = vmatprep.mubr.f32.mxu0 0.0
    %v1314 = vand.u32 %v31, 4294901760
    %v1315 = vsub.f32 %v31, %v1314
    %v1316 = vand.u32 %v1315, 4294901760
    %v1317 = vsub.f32 %v1315, %v1316
    %v1318 = vand.u32 %v1317, 4294901760
    %1319 = vmatmul.mubr.f32.gmra.mrb[0].mxu0 %v1318
    %v1320 = vpop.f32.mrb[0].mxu0
    %v1321 = vadd.f32 0.0, %v1320
    %v1322 = vpop.f32.mrb[0].mxu0
    %v1323 = vadd.f32 0.0, %v1322
    %1324 = vmatprep.mubr.f32.mxu0 0.0
    %v1325 = vand.u32 %v34, 4294901760
    %v1326 = vsub.f32 %v34, %v1325
    %v1327 = vand.u32 %v1326, 4294901760
    %v1328 = vsub.f32 %v1326, %v1327
    %v1329 = vand.u32 %v1328, 4294901760
    %1330 = vmatmul.mubr.f32.gmra.mrb[0].mxu0 %v1329
    %v1331 = vpop.f32.mrb[0].mxu0
    %v1332 = vadd.f32 0.0, %v1331
    %v1333 = vpop.f32.mrb[0].mxu0
    %v1334 = vadd.f32 0.0, %v1333
    %1335 = vmatprep.mubr.f32.mxu0 0.0
    %v1336 = vand.u32 %v37, 4294901760
    %v1337 = vsub.f32 %v37, %v1336
    %v1338 = vand.u32 %v1337, 4294901760
    %v1339 = vsub.f32 %v1337, %v1338
    %v1340 = vand.u32 %v1339, 4294901760
    %1341 = vmatmul.mubr.f32.gmra.mrb[0].mxu0 %v1340
    %v1342 = vpop.f32.mrb[0].mxu0
    %v1343 = vadd.f32 0.0, %v1342
    %v1344 = vpop.f32.mrb[0].mxu0
    %v1345 = vadd.f32 0.0, %v1344
    %1346 = vdwg.mxu0
    %v1347 = vand.u32 %v1234, 4294901760
    %v1348 = vsub.f32 %v1234, %v1347
    %v1349 = vand.u32 %v1348, 4294901760
    %v1350 = vsub.f32 %v1348, %v1349
    %v1351 = vand.u32 %v1350, 4294901760
    %1352 = vmatprep.subr.mxu0 %v1351
    %v1353 = vand.u32 %v1232, 4294901760
    %v1354 = vsub.f32 %v1232, %v1353
    %v1355 = vand.u32 %v1354, 4294901760
    %v1356 = vsub.f32 %v1354, %v1355
    %v1357 = vand.u32 %v1356, 4294901760
    %1358 = vmatpush1.msra.mxu0 %v1357
    %1359 = vmatprep.subr.mxu0 0.0
    %1360 = vmatpush1.msra.mxu0 0.0
    %1361 = vmatprep.subr.mxu0 0.0
    %1362 = vmatpush1.msra.mxu0 0.0
    %1363 = vmatprep.subr.mxu0 0.0
    %1364 = vmatpush1.msra.mxu0 0.0
    %1365 = vmatprep.subr.mxu0 0.0
    %1366 = vmatpush1.msra.mxu0 0.0
    %1367 = vmatprep.subr.mxu0 0.0
    %1368 = vmatpush1.msra.mxu0 0.0
    %1369 = vmatprep.subr.mxu0 0.0
    %1370 = vmatpush1.msra.mxu0 0.0
    %1371 = vmatprep.subr.mxu0 0.0
    %1372 = vmatpush1.msra.mxu0 0.0
    %1373 = vmatprep.subr.mxu0 0.0
    %1374 = vmatpush1.msra.mxu0 0.0
    %1375 = vmatprep.subr.mxu0 0.0
    %1376 = vmatpush1.msra.mxu0 0.0
    %1377 = vmatprep.subr.mxu0 0.0
    %1378 = vmatpush1.msra.mxu0 0.0
    %1379 = vmatprep.subr.mxu0 0.0
    %1380 = vmatpush1.msra.mxu0 0.0
    %1381 = vmatprep.subr.mxu0 0.0
    %1382 = vmatpush1.msra.mxu0 0.0
    %1383 = vmatprep.subr.mxu0 0.0
    %1384 = vmatpush1.msra.mxu0 0.0
    %1385 = vmatprep.subr.mxu0 0.0
    %1386 = vmatpush1.msra.mxu0 0.0
    %1387 = vmatprep.subr.mxu0 0.0
    %1388 = vmatpush1.msra.mxu0 0.0
    %1389 = vmatprep.subr.mxu0 0.0
    %1390 = vmatpush1.msra.mxu0 0.0
    %1391 = vmatprep.subr.mxu0 0.0
    %1392 = vmatpush1.msra.mxu0 0.0
    %1393 = vmatprep.subr.mxu0 0.0
    %1394 = vmatpush1.msra.mxu0 0.0
    %1395 = vmatprep.subr.mxu0 0.0
    %1396 = vmatpush1.msra.mxu0 0.0
    %1397 = vmatprep.subr.mxu0 0.0
    %1398 = vmatpush1.msra.mxu0 0.0
    %1399 = vmatprep.subr.mxu0 0.0
    %1400 = vmatpush1.msra.mxu0 0.0
    %1401 = vmatprep.subr.mxu0 0.0
    %1402 = vmatpush1.msra.mxu0 0.0
    %1403 = vmatprep.subr.mxu0 0.0
    %1404 = vmatpush1.msra.mxu0 0.0
    %1405 = vmatprep.subr.mxu0 0.0
    %1406 = vmatpush1.msra.mxu0 0.0
    %1407 = vmatprep.subr.mxu0 0.0
    %1408 = vmatpush1.msra.mxu0 0.0
    %1409 = vmatprep.subr.mxu0 0.0
    %1410 = vmatpush1.msra.mxu0 0.0
    %1411 = vmatprep.subr.mxu0 0.0
    %1412 = vmatpush1.msra.mxu0 0.0
    %1413 = vmatprep.subr.mxu0 0.0
    %1414 = vmatpush1.msra.mxu0 0.0
    %1415 = vmatprep.subr.mxu0 0.0
    %1416 = vmatpush1.msra.mxu0 0.0
    %1417 = vmatprep.subr.mxu0 0.0
    %1418 = vmatpush1.msra.mxu0 0.0
    %1419 = vmatprep.subr.mxu0 0.0
    %1420 = vmatpush1.msra.mxu0 0.0
    %1421 = vmatprep.mubr.f32.mxu0 0.0
    %v1422 = vand.u32 %v28, 4294901760
    %1423 = vmatmul.mubr.f32.gmra.mrb[0].mxu0 %v1422
    %v1424 = vpop.f32.mrb[0].mxu0
    %v1425 = vadd.f32 %v1310, %v1424
    %v1426 = vpop.f32.mrb[0].mxu0
    %v1427 = vadd.f32 %v1312, %v1426
    %1428 = vmatprep.mubr.f32.mxu0 0.0
    %v1429 = vand.u32 %v31, 4294901760
    %1430 = vmatmul.mubr.f32.gmra.mrb[0].mxu0 %v1429
    %v1431 = vpop.f32.mrb[0].mxu0
    %v1432 = vadd.f32 %v1321, %v1431
    %v1433 = vpop.f32.mrb[0].mxu0
    %v1434 = vadd.f32 %v1323, %v1433
    %1435 = vmatprep.mubr.f32.mxu0 0.0
    %v1436 = vand.u32 %v34, 4294901760
    %1437 = vmatmul.mubr.f32.gmra.mrb[0].mxu0 %v1436
    %v1438 = vpop.f32.mrb[0].mxu0
    %v1439 = vadd.f32 %v1332, %v1438
    %v1440 = vpop.f32.mrb[0].mxu0
    %v1441 = vadd.f32 %v1334, %v1440
    %1442 = vmatprep.mubr.f32.mxu0 0.0
    %v1443 = vand.u32 %v37, 4294901760
    %1444 = vmatmul.mubr.f32.gmra.mrb[0].mxu0 %v1443
    %v1445 = vpop.f32.mrb[0].mxu0
    %v1446 = vadd.f32 %v1343, %v1445
    %v1447 = vpop.f32.mrb[0].mxu0
    %v1448 = vadd.f32 %v1345, %v1447
    %1449 = vdwg.mxu0
    %v1450 = vand.u32 %v1234, 4294901760
    %v1451 = vsub.f32 %v1234, %v1450
    %1452 = vmatprep.subr.mxu0 %v1451
    %v1453 = vand.u32 %v1232, 4294901760
    %v1454 = vsub.f32 %v1232, %v1453
    %1455 = vmatpush1.msra.mxu0 %v1454
    %1456 = vmatprep.subr.mxu0 0.0
    %1457 = vmatpush1.msra.mxu0 0.0
    %1458 = vmatprep.subr.mxu0 0.0
    %1459 = vmatpush1.msra.mxu0 0.0
    %1460 = vmatprep.subr.mxu0 0.0
    %1461 = vmatpush1.msra.mxu0 0.0
    %1462 = vmatprep.subr.mxu0 0.0
    %1463 = vmatpush1.msra.mxu0 0.0
    %1464 = vmatprep.subr.mxu0 0.0
    %1465 = vmatpush1.msra.mxu0 0.0
    %1466 = vmatprep.subr.mxu0 0.0
    %1467 = vmatpush1.msra.mxu0 0.0
    %1468 = vmatprep.subr.mxu0 0.0
    %1469 = vmatpush1.msra.mxu0 0.0
    %1470 = vmatprep.subr.mxu0 0.0
    %1471 = vmatpush1.msra.mxu0 0.0
    %1472 = vmatprep.subr.mxu0 0.0
    %1473 = vmatpush1.msra.mxu0 0.0
    %1474 = vmatprep.subr.mxu0 0.0
    %1475 = vmatpush1.msra.mxu0 0.0
    %1476 = vmatprep.subr.mxu0 0.0
    %1477 = vmatpush1.msra.mxu0 0.0
    %1478 = vmatprep.subr.mxu0 0.0
    %1479 = vmatpush1.msra.mxu0 0.0
    %1480 = vmatprep.subr.mxu0 0.0
    %1481 = vmatpush1.msra.mxu0 0.0
    %1482 = vmatprep.subr.mxu0 0.0
    %1483 = vmatpush1.msra.mxu0 0.0
    %1484 = vmatprep.subr.mxu0 0.0
    %1485 = vmatpush1.msra.mxu0 0.0
    %1486 = vmatprep.subr.mxu0 0.0
    %1487 = vmatpush1.msra.mxu0 0.0
    %1488 = vmatprep.subr.mxu0 0.0
    %1489 = vmatpush1.msra.mxu0 0.0
    %1490 = vmatprep.subr.mxu0 0.0
    %1491 = vmatpush1.msra.mxu0 0.0
    %1492 = vmatprep.subr.mxu0 0.0
    %1493 = vmatpush1.msra.mxu0 0.0
    %1494 = vmatprep.subr.mxu0 0.0
    %1495 = vmatpush1.msra.mxu0 0.0
    %1496 = vmatprep.subr.mxu0 0.0
    %1497 = vmatpush1.msra.mxu0 0.0
    %1498 = vmatprep.subr.mxu0 0.0
    %1499 = vmatpush1.msra.mxu0 0.0
    %1500 = vmatprep.subr.mxu0 0.0
    %1501 = vmatpush1.msra.mxu0 0.0
    %1502 = vmatprep.subr.mxu0 0.0
    %1503 = vmatpush1.msra.mxu0 0.0
    %1504 = vmatprep.subr.mxu0 0.0
    %1505 = vmatpush1.msra.mxu0 0.0
    %1506 = vmatprep.subr.mxu0 0.0
    %1507 = vmatpush1.msra.mxu0 0.0
    %1508 = vmatprep.subr.mxu0 0.0
    %1509 = vmatpush1.msra.mxu0 0.0
    %1510 = vmatprep.subr.mxu0 0.0
    %1511 = vmatpush1.msra.mxu0 0.0
    %1512 = vmatprep.subr.mxu0 0.0
    %1513 = vmatpush1.msra.mxu0 0.0
    %1514 = vmatprep.subr.mxu0 0.0
    %1515 = vmatpush1.msra.mxu0 0.0
    %1516 = vmatprep.subr.mxu0 0.0
    %1517 = vmatpush1.msra.mxu0 0.0
    %1518 = vmatprep.mubr.f32.mxu0 0.0
    %v1519 = vand.u32 %v28, 4294901760
    %v1520 = vsub.f32 %v28, %v1519
    %1521 = vmatmul.mubr.f32.gmra.mrb[0].mxu0 %v1520
    %v1522 = vpop.f32.mrb[0].mxu0
    %v1523 = vadd.f32 %v1425, %v1522
    %v1524 = vpop.f32.mrb[0].mxu0
    %v1525 = vadd.f32 %v1427, %v1524
    %1526 = vmatprep.mubr.f32.mxu0 0.0
    %v1527 = vand.u32 %v31, 4294901760
    %v1528 = vsub.f32 %v31, %v1527
    %1529 = vmatmul.mubr.f32.gmra.mrb[0].mxu0 %v1528
    %v1530 = vpop.f32.mrb[0].mxu0
    %v1531 = vadd.f32 %v1432, %v1530
    %v1532 = vpop.f32.mrb[0].mxu0
    %v1533 = vadd.f32 %v1434, %v1532
    %1534 = vmatprep.mubr.f32.mxu0 0.0
    %v1535 = vand.u32 %v34, 4294901760
    %v1536 = vsub.f32 %v34, %v1535
    %1537 = vmatmul.mubr.f32.gmra.mrb[0].mxu0 %v1536
    %v1538 = vpop.f32.mrb[0].mxu0
    %v1539 = vadd.f32 %v1439, %v1538
    %v1540 = vpop.f32.mrb[0].mxu0
    %v1541 = vadd.f32 %v1441, %v1540
    %1542 = vmatprep.mubr.f32.mxu0 0.0
    %v1543 = vand.u32 %v37, 4294901760
    %v1544 = vsub.f32 %v37, %v1543
    %1545 = vmatmul.mubr.f32.gmra.mrb[0].mxu0 %v1544
    %v1546 = vpop.f32.mrb[0].mxu0
    %v1547 = vadd.f32 %v1446, %v1546
    %v1548 = vpop.f32.mrb[0].mxu0
    %v1549 = vadd.f32 %v1448, %v1548
    %1550 = vdwg.mxu0
    %v1551 = vand.u32 %v1234, 4294901760
    %1552 = vmatprep.subr.mxu0 %v1551
    %v1553 = vand.u32 %v1232, 4294901760
    %1554 = vmatpush1.msra.mxu0 %v1553
    %1555 = vmatprep.subr.mxu0 0.0
    %1556 = vmatpush1.msra.mxu0 0.0
    %1557 = vmatprep.subr.mxu0 0.0
    %1558 = vmatpush1.msra.mxu0 0.0
    %1559 = vmatprep.subr.mxu0 0.0
    %1560 = vmatpush1.msra.mxu0 0.0
    %1561 = vmatprep.subr.mxu0 0.0
    %1562 = vmatpush1.msra.mxu0 0.0
    %1563 = vmatprep.subr.mxu0 0.0
    %1564 = vmatpush1.msra.mxu0 0.0
    %1565 = vmatprep.subr.mxu0 0.0
    %1566 = vmatpush1.msra.mxu0 0.0
    %1567 = vmatprep.subr.mxu0 0.0
    %1568 = vmatpush1.msra.mxu0 0.0
    %1569 = vmatprep.subr.mxu0 0.0
    %1570 = vmatpush1.msra.mxu0 0.0
    %1571 = vmatprep.subr.mxu0 0.0
    %1572 = vmatpush1.msra.mxu0 0.0
    %1573 = vmatprep.subr.mxu0 0.0
    %1574 = vmatpush1.msra.mxu0 0.0
    %1575 = vmatprep.subr.mxu0 0.0
    %1576 = vmatpush1.msra.mxu0 0.0
    %1577 = vmatprep.subr.mxu0 0.0
    %1578 = vmatpush1.msra.mxu0 0.0
    %1579 = vmatprep.subr.mxu0 0.0
    %1580 = vmatpush1.msra.mxu0 0.0
    %1581 = vmatprep.subr.mxu0 0.0
    %1582 = vmatpush1.msra.mxu0 0.0
    %1583 = vmatprep.subr.mxu0 0.0
    %1584 = vmatpush1.msra.mxu0 0.0
    %1585 = vmatprep.subr.mxu0 0.0
    %1586 = vmatpush1.msra.mxu0 0.0
    %1587 = vmatprep.subr.mxu0 0.0
    %1588 = vmatpush1.msra.mxu0 0.0
    %1589 = vmatprep.subr.mxu0 0.0
    %1590 = vmatpush1.msra.mxu0 0.0
    %1591 = vmatprep.subr.mxu0 0.0
    %1592 = vmatpush1.msra.mxu0 0.0
    %1593 = vmatprep.subr.mxu0 0.0
    %1594 = vmatpush1.msra.mxu0 0.0
    %1595 = vmatprep.subr.mxu0 0.0
    %1596 = vmatpush1.msra.mxu0 0.0
    %1597 = vmatprep.subr.mxu0 0.0
    %1598 = vmatpush1.msra.mxu0 0.0
    %1599 = vmatprep.subr.mxu0 0.0
    %1600 = vmatpush1.msra.mxu0 0.0
    %1601 = vmatprep.subr.mxu0 0.0
    %1602 = vmatpush1.msra.mxu0 0.0
    %1603 = vmatprep.subr.mxu0 0.0
    %1604 = vmatpush1.msra.mxu0 0.0
    %1605 = vmatprep.subr.mxu0 0.0
    %1606 = vmatpush1.msra.mxu0 0.0
    %1607 = vmatprep.subr.mxu0 0.0
    %1608 = vmatpush1.msra.mxu0 0.0
    %1609 = vmatprep.subr.mxu0 0.0
    %1610 = vmatpush1.msra.mxu0 0.0
    %1611 = vmatprep.subr.mxu0 0.0
    %1612 = vmatpush1.msra.mxu0 0.0
    %1613 = vmatprep.subr.mxu0 0.0
    %1614 = vmatpush1.msra.mxu0 0.0
    %1615 = vmatprep.subr.mxu0 0.0
    %1616 = vmatpush1.msra.mxu0 0.0
    %1617 = vmatprep.mubr.f32.mxu0 0.0
    %v1618 = vand.u32 %v28, 4294901760
    %v1619 = vsub.f32 %v28, %v1618
    %v1620 = vand.u32 %v1619, 4294901760
    %1621 = vmatmul.mubr.f32.gmra.mrb[0].mxu0 %v1620
    %v1622 = vpop.f32.mrb[0].mxu0
    %v1623 = vadd.f32 %v1523, %v1622
    %v1624 = vpop.f32.mrb[0].mxu0
    %v1625 = vadd.f32 %v1525, %v1624
    %1626 = vmatprep.mubr.f32.mxu0 0.0
    %v1627 = vand.u32 %v31, 4294901760
    %v1628 = vsub.f32 %v31, %v1627
    %v1629 = vand.u32 %v1628, 4294901760
    %1630 = vmatmul.mubr.f32.gmra.mrb[0].mxu0 %v1629
    %v1631 = vpop.f32.mrb[0].mxu0
    %v1632 = vadd.f32 %v1531, %v1631
    %v1633 = vpop.f32.mrb[0].mxu0
    %v1634 = vadd.f32 %v1533, %v1633
    %1635 = vmatprep.mubr.f32.mxu0 0.0
    %v1636 = vand.u32 %v34, 4294901760
    %v1637 = vsub.f32 %v34, %v1636
    %v1638 = vand.u32 %v1637, 4294901760
    %1639 = vmatmul.mubr.f32.gmra.mrb[0].mxu0 %v1638
    %v1640 = vpop.f32.mrb[0].mxu0
    %v1641 = vadd.f32 %v1539, %v1640
    %v1642 = vpop.f32.mrb[0].mxu0
    %v1643 = vadd.f32 %v1541, %v1642
    %1644 = vmatprep.mubr.f32.mxu0 0.0
    %v1645 = vand.u32 %v37, 4294901760
    %v1646 = vsub.f32 %v37, %v1645
    %v1647 = vand.u32 %v1646, 4294901760
    %1648 = vmatmul.mubr.f32.gmra.mrb[0].mxu0 %v1647
    %v1649 = vpop.f32.mrb[0].mxu0
    %v1650 = vadd.f32 %v1547, %v1649
    %v1651 = vpop.f32.mrb[0].mxu0
    %v1652 = vadd.f32 %v1549, %v1651
    %1653 = vdwg.mxu0
    %v1654 = vand.u32 %v1234, 4294901760
    %v1655 = vsub.f32 %v1234, %v1654
    %v1656 = vand.u32 %v1655, 4294901760
    %1657 = vmatprep.subr.mxu0 %v1656
    %v1658 = vand.u32 %v1232, 4294901760
    %v1659 = vsub.f32 %v1232, %v1658
    %v1660 = vand.u32 %v1659, 4294901760
    %1661 = vmatpush1.msra.mxu0 %v1660
    %1662 = vmatprep.subr.mxu0 0.0
    %1663 = vmatpush1.msra.mxu0 0.0
    %1664 = vmatprep.subr.mxu0 0.0
    %1665 = vmatpush1.msra.mxu0 0.0
    %1666 = vmatprep.subr.mxu0 0.0
    %1667 = vmatpush1.msra.mxu0 0.0
    %1668 = vmatprep.subr.mxu0 0.0
    %1669 = vmatpush1.msra.mxu0 0.0
    %1670 = vmatprep.subr.mxu0 0.0
    %1671 = vmatpush1.msra.mxu0 0.0
    %1672 = vmatprep.subr.mxu0 0.0
    %1673 = vmatpush1.msra.mxu0 0.0
    %1674 = vmatprep.subr.mxu0 0.0
    %1675 = vmatpush1.msra.mxu0 0.0
    %1676 = vmatprep.subr.mxu0 0.0
    %1677 = vmatpush1.msra.mxu0 0.0
    %1678 = vmatprep.subr.mxu0 0.0
    %1679 = vmatpush1.msra.mxu0 0.0
    %1680 = vmatprep.subr.mxu0 0.0
    %1681 = vmatpush1.msra.mxu0 0.0
    %1682 = vmatprep.subr.mxu0 0.0
    %1683 = vmatpush1.msra.mxu0 0.0
    %1684 = vmatprep.subr.mxu0 0.0
    %1685 = vmatpush1.msra.mxu0 0.0
    %1686 = vmatprep.subr.mxu0 0.0
    %1687 = vmatpush1.msra.mxu0 0.0
    %1688 = vmatprep.subr.mxu0 0.0
    %1689 = vmatpush1.msra.mxu0 0.0
    %1690 = vmatprep.subr.mxu0 0.0
    %1691 = vmatpush1.msra.mxu0 0.0
    %1692 = vmatprep.subr.mxu0 0.0
    %1693 = vmatpush1.msra.mxu0 0.0
    %1694 = vmatprep.subr.mxu0 0.0
    %1695 = vmatpush1.msra.mxu0 0.0
    %1696 = vmatprep.subr.mxu0 0.0
    %1697 = vmatpush1.msra.mxu0 0.0
    %1698 = vmatprep.subr.mxu0 0.0
    %1699 = vmatpush1.msra.mxu0 0.0
    %1700 = vmatprep.subr.mxu0 0.0
    %1701 = vmatpush1.msra.mxu0 0.0
    %1702 = vmatprep.subr.mxu0 0.0
    %1703 = vmatpush1.msra.mxu0 0.0
    %1704 = vmatprep.subr.mxu0 0.0
    %1705 = vmatpush1.msra.mxu0 0.0
    %1706 = vmatprep.subr.mxu0 0.0
    %1707 = vmatpush1.msra.mxu0 0.0
    %1708 = vmatprep.subr.mxu0 0.0
    %1709 = vmatpush1.msra.mxu0 0.0
    %1710 = vmatprep.subr.mxu0 0.0
    %1711 = vmatpush1.msra.mxu0 0.0
    %1712 = vmatprep.subr.mxu0 0.0
    %1713 = vmatpush1.msra.mxu0 0.0
    %1714 = vmatprep.subr.mxu0 0.0
    %1715 = vmatpush1.msra.mxu0 0.0
    %1716 = vmatprep.subr.mxu0 0.0
    %1717 = vmatpush1.msra.mxu0 0.0
    %1718 = vmatprep.subr.mxu0 0.0
    %1719 = vmatpush1.msra.mxu0 0.0
    %1720 = vmatprep.subr.mxu0 0.0
    %1721 = vmatpush1.msra.mxu0 0.0
    %1722 = vmatprep.subr.mxu0 0.0
    %1723 = vmatpush1.msra.mxu0 0.0
    %1724 = vmatprep.mubr.f32.mxu0 0.0
    %v1725 = vand.u32 %v28, 4294901760
    %1726 = vmatmul.mubr.f32.gmra.mrb[0].mxu0 %v1725
    %v1727 = vpop.f32.mrb[0].mxu0
    %v1728 = vadd.f32 %v1623, %v1727
    %v1729 = vpop.f32.mrb[0].mxu0
    %v1730 = vadd.f32 %v1625, %v1729
    %1731 = vmatprep.mubr.f32.mxu0 0.0
    %v1732 = vand.u32 %v31, 4294901760
    %1733 = vmatmul.mubr.f32.gmra.mrb[0].mxu0 %v1732
    %v1734 = vpop.f32.mrb[0].mxu0
    %v1735 = vadd.f32 %v1632, %v1734
    %v1736 = vpop.f32.mrb[0].mxu0
    %v1737 = vadd.f32 %v1634, %v1736
    %1738 = vmatprep.mubr.f32.mxu0 0.0
    %v1739 = vand.u32 %v34, 4294901760
    %1740 = vmatmul.mubr.f32.gmra.mrb[0].mxu0 %v1739
    %v1741 = vpop.f32.mrb[0].mxu0
    %v1742 = vadd.f32 %v1641, %v1741
    %v1743 = vpop.f32.mrb[0].mxu0
    %v1744 = vadd.f32 %v1643, %v1743
    %1745 = vmatprep.mubr.f32.mxu0 0.0
    %v1746 = vand.u32 %v37, 4294901760
    %1747 = vmatmul.mubr.f32.gmra.mrb[0].mxu0 %v1746
    %v1748 = vpop.f32.mrb[0].mxu0
    %v1749 = vadd.f32 %v1650, %v1748
    %v1750 = vpop.f32.mrb[0].mxu0
    %v1751 = vadd.f32 %v1652, %v1750
    %1752 = vdwg.mxu0
    %v1753 = vand.u32 %v1234, 4294901760
    %1754 = vmatprep.subr.mxu0 %v1753
    %v1755 = vand.u32 %v1232, 4294901760
    %1756 = vmatpush1.msra.mxu0 %v1755
    %1757 = vmatprep.subr.mxu0 0.0
    %1758 = vmatpush1.msra.mxu0 0.0
    %1759 = vmatprep.subr.mxu0 0.0
    %1760 = vmatpush1.msra.mxu0 0.0
    %1761 = vmatprep.subr.mxu0 0.0
    %1762 = vmatpush1.msra.mxu0 0.0
    %1763 = vmatprep.subr.mxu0 0.0
    %1764 = vmatpush1.msra.mxu0 0.0
    %1765 = vmatprep.subr.mxu0 0.0
    %1766 = vmatpush1.msra.mxu0 0.0
    %1767 = vmatprep.subr.mxu0 0.0
    %1768 = vmatpush1.msra.mxu0 0.0
    %1769 = vmatprep.subr.mxu0 0.0
    %1770 = vmatpush1.msra.mxu0 0.0
    %1771 = vmatprep.subr.mxu0 0.0
    %1772 = vmatpush1.msra.mxu0 0.0
    %1773 = vmatprep.subr.mxu0 0.0
    %1774 = vmatpush1.msra.mxu0 0.0
    %1775 = vmatprep.subr.mxu0 0.0
    %1776 = vmatpush1.msra.mxu0 0.0
    %1777 = vmatprep.subr.mxu0 0.0
    %1778 = vmatpush1.msra.mxu0 0.0
    %1779 = vmatprep.subr.mxu0 0.0
    %1780 = vmatpush1.msra.mxu0 0.0
    %1781 = vmatprep.subr.mxu0 0.0
    %1782 = vmatpush1.msra.mxu0 0.0
    %1783 = vmatprep.subr.mxu0 0.0
    %1784 = vmatpush1.msra.mxu0 0.0
    %1785 = vmatprep.subr.mxu0 0.0
    %1786 = vmatpush1.msra.mxu0 0.0
    %1787 = vmatprep.subr.mxu0 0.0
    %1788 = vmatpush1.msra.mxu0 0.0
    %1789 = vmatprep.subr.mxu0 0.0
    %1790 = vmatpush1.msra.mxu0 0.0
    %1791 = vmatprep.subr.mxu0 0.0
    %1792 = vmatpush1.msra.mxu0 0.0
    %1793 = vmatprep.subr.mxu0 0.0
    %1794 = vmatpush1.msra.mxu0 0.0
    %1795 = vmatprep.subr.mxu0 0.0
    %1796 = vmatpush1.msra.mxu0 0.0
    %1797 = vmatprep.subr.mxu0 0.0
    %1798 = vmatpush1.msra.mxu0 0.0
    %1799 = vmatprep.subr.mxu0 0.0
    %1800 = vmatpush1.msra.mxu0 0.0
    %1801 = vmatprep.subr.mxu0 0.0
    %1802 = vmatpush1.msra.mxu0 0.0
    %1803 = vmatprep.subr.mxu0 0.0
    %1804 = vmatpush1.msra.mxu0 0.0
    %1805 = vmatprep.subr.mxu0 0.0
    %1806 = vmatpush1.msra.mxu0 0.0
    %1807 = vmatprep.subr.mxu0 0.0
    %1808 = vmatpush1.msra.mxu0 0.0
    %1809 = vmatprep.subr.mxu0 0.0
    %1810 = vmatpush1.msra.mxu0 0.0
    %1811 = vmatprep.subr.mxu0 0.0
    %1812 = vmatpush1.msra.mxu0 0.0
    %1813 = vmatprep.subr.mxu0 0.0
    %1814 = vmatpush1.msra.mxu0 0.0
    %1815 = vmatprep.subr.mxu0 0.0
    %1816 = vmatpush1.msra.mxu0 0.0
    %1817 = vmatprep.subr.mxu0 0.0
    %1818 = vmatpush1.msra.mxu0 0.0
    %1819 = vmatprep.mubr.f32.mxu0 0.0
    %v1820 = vand.u32 %v28, 4294901760
    %1821 = vmatmul.mubr.f32.gmra.mrb[0].mxu0 %v1820
    %v1822 = vpop.f32.mrb[0].mxu0
    %v1823 = vadd.f32 %v1728, %v1822
    %v1824 = vpop.f32.mrb[0].mxu0
    %v1825 = vadd.f32 %v1730, %v1824
    %1826 = vmatprep.mubr.f32.mxu0 0.0
    %v1827 = vand.u32 %v31, 4294901760
    %1828 = vmatmul.mubr.f32.gmra.mrb[0].mxu0 %v1827
    %v1829 = vpop.f32.mrb[0].mxu0
    %v1830 = vadd.f32 %v1735, %v1829
    %v1831 = vpop.f32.mrb[0].mxu0
    %v1832 = vadd.f32 %v1737, %v1831
    %1833 = vmatprep.mubr.f32.mxu0 0.0
    %v1834 = vand.u32 %v34, 4294901760
    %1835 = vmatmul.mubr.f32.gmra.mrb[0].mxu0 %v1834
    %v1836 = vpop.f32.mrb[0].mxu0
    %v1837 = vadd.f32 %v1742, %v1836
    %v1838 = vpop.f32.mrb[0].mxu0
    %v1839 = vadd.f32 %v1744, %v1838
    %1840 = vmatprep.mubr.f32.mxu0 0.0
    %v1841 = vand.u32 %v37, 4294901760
    %1842 = vmatmul.mubr.f32.gmra.mrb[0].mxu0 %v1841
    %v1843 = vpop.f32.mrb[0].mxu0
    %v1844 = vadd.f32 %v1749, %v1843
    %v1845 = vpop.f32.mrb[0].mxu0
    %v1846 = vadd.f32 %v1751, %v1845
    %1847 = vdwg.mxu0
    %v1848 = vmax.f32 %v1823, 0.0
    %v1849 = vmax.f32 %v1825, 0.0
    %v1850 = vmax.f32 %v1830, 0.0
    %v1851 = vmax.f32 %v1832, 0.0
    %v1852 = vmax.f32 %v1837, 0.0
    %v1853 = vmax.f32 %v1839, 0.0
    %v1854 = vmax.f32 %v1844, 0.0
    %v1855 = vmax.f32 %v1846, 0.0
    %v1856 = vmul.f32 %v1848, %v1848
    %v1857 = vmul.f32 %v1849, %v1849
    %v1858 = vmul.f32 %v1850, %v1850
    %v1859 = vmul.f32 %v1851, %v1851
    %v1860 = vmul.f32 %v1852, %v1852
    %v1861 = vmul.f32 %v1853, %v1853
    %v1862 = vmul.f32 %v1854, %v1854
    %v1863 = vmul.f32 %v1855, %v1855
    %v1864 = vand.u32 %v1857, 4294901760
    %1865 = vmatprep.subr.mxu0 %v1864
    %v1866 = vand.u32 %v1856, 4294901760
    %1867 = vmatpush1.msra.mxu0 %v1866
    %v1868 = vand.u32 %v1859, 4294901760
    %1869 = vmatprep.subr.mxu0 %v1868
    %v1870 = vand.u32 %v1858, 4294901760
    %1871 = vmatpush1.msra.mxu0 %v1870
    %v1872 = vand.u32 %v1861, 4294901760
    %1873 = vmatprep.subr.mxu0 %v1872
    %v1874 = vand.u32 %v1860, 4294901760
    %1875 = vmatpush1.msra.mxu0 %v1874
    %v1876 = vand.u32 %v1863, 4294901760
    %1877 = vmatprep.subr.mxu0 %v1876
    %v1878 = vand.u32 %v1862, 4294901760
    %1879 = vmatpush1.msra.mxu0 %v1878
    %1880 = vmatprep.subr.mxu0 0.0
    %1881 = vmatpush1.msra.mxu0 0.0
    %1882 = vmatprep.subr.mxu0 0.0
    %1883 = vmatpush1.msra.mxu0 0.0
    %1884 = vmatprep.subr.mxu0 0.0
    %1885 = vmatpush1.msra.mxu0 0.0
    %1886 = vmatprep.subr.mxu0 0.0
    %1887 = vmatpush1.msra.mxu0 0.0
    %1888 = vmatprep.subr.mxu0 0.0
    %1889 = vmatpush1.msra.mxu0 0.0
    %1890 = vmatprep.subr.mxu0 0.0
    %1891 = vmatpush1.msra.mxu0 0.0
    %1892 = vmatprep.subr.mxu0 0.0
    %1893 = vmatpush1.msra.mxu0 0.0
    %1894 = vmatprep.subr.mxu0 0.0
    %1895 = vmatpush1.msra.mxu0 0.0
    %1896 = vmatprep.subr.mxu0 0.0
    %1897 = vmatpush1.msra.mxu0 0.0
    %1898 = vmatprep.subr.mxu0 0.0
    %1899 = vmatpush1.msra.mxu0 0.0
    %1900 = vmatprep.subr.mxu0 0.0
    %1901 = vmatpush1.msra.mxu0 0.0
    %1902 = vmatprep.subr.mxu0 0.0
    %1903 = vmatpush1.msra.mxu0 0.0
    %1904 = vmatprep.subr.mxu0 0.0
    %1905 = vmatpush1.msra.mxu0 0.0
    %1906 = vmatprep.subr.mxu0 0.0
    %1907 = vmatpush1.msra.mxu0 0.0
    %1908 = vmatprep.subr.mxu0 0.0
    %1909 = vmatpush1.msra.mxu0 0.0
    %1910 = vmatprep.subr.mxu0 0.0
    %1911 = vmatpush1.msra.mxu0 0.0
    %1912 = vmatprep.subr.mxu0 0.0
    %1913 = vmatpush1.msra.mxu0 0.0
    %1914 = vmatprep.subr.mxu0 0.0
    %1915 = vmatpush1.msra.mxu0 0.0
    %1916 = vmatprep.subr.mxu0 0.0
    %1917 = vmatpush1.msra.mxu0 0.0
    %1918 = vmatprep.subr.mxu0 0.0
    %1919 = vmatpush1.msra.mxu0 0.0
    %1920 = vmatprep.subr.mxu0 0.0
    %1921 = vmatpush1.msra.mxu0 0.0
    %1922 = vmatprep.subr.mxu0 0.0
    %1923 = vmatpush1.msra.mxu0 0.0
    %1924 = vmatprep.subr.mxu0 0.0
    %1925 = vmatpush1.msra.mxu0 0.0
    %1926 = vmatprep.subr.mxu0 0.0
    %1927 = vmatpush1.msra.mxu0 0.0
    %1928 = vmatprep.subr.mxu0 0.0
    %1929 = vmatpush1.msra.mxu0 0.0
    %1930 = vmatprep.subr.mxu0 0.0
    %1931 = vmatpush1.msra.mxu0 0.0
    %1932 = vmatprep.subr.mxu0 0.0
    %1933 = vmatpush1.msra.mxu0 0.0
    %1934 = vmatprep.subr.mxu0 0.0
    %1935 = vmatpush1.msra.mxu0 0.0
    %1936 = vmatprep.mubr.f32.mxu0 0.0
    %v1937 = vand.u32 %v681, 4294901760
    %v1938 = vsub.f32 %v681, %v1937
    %v1939 = vand.u32 %v1938, 4294901760
    %v1940 = vsub.f32 %v1938, %v1939
    %v1941 = vand.u32 %v1940, 4294901760
    %1942 = vmatmul.mubr.f32.gmra.mrb[0].mxu0 %v1941
    %v1943 = vpop.f32.mrb[0].mxu0
    %v1944 = vadd.f32 %v677, %v1943
    %v1945 = vpop.f32.mrb[0].mxu0
    %v1946 = vadd.f32 %v677, %v1945
    %1947 = vdwg.mxu0
    %v1948 = vand.u32 %v1857, 4294901760
    %v1949 = vsub.f32 %v1857, %v1948
    %v1950 = vand.u32 %v1949, 4294901760
    %v1951 = vsub.f32 %v1949, %v1950
    %v1952 = vand.u32 %v1951, 4294901760
    %1953 = vmatprep.subr.mxu0 %v1952
    %v1954 = vand.u32 %v1856, 4294901760
    %v1955 = vsub.f32 %v1856, %v1954
    %v1956 = vand.u32 %v1955, 4294901760
    %v1957 = vsub.f32 %v1955, %v1956
    %v1958 = vand.u32 %v1957, 4294901760
    %1959 = vmatpush1.msra.mxu0 %v1958
    %v1960 = vand.u32 %v1859, 4294901760
    %v1961 = vsub.f32 %v1859, %v1960
    %v1962 = vand.u32 %v1961, 4294901760
    %v1963 = vsub.f32 %v1961, %v1962
    %v1964 = vand.u32 %v1963, 4294901760
    %1965 = vmatprep.subr.mxu0 %v1964
    %v1966 = vand.u32 %v1858, 4294901760
    %v1967 = vsub.f32 %v1858, %v1966
    %v1968 = vand.u32 %v1967, 4294901760
    %v1969 = vsub.f32 %v1967, %v1968
    %v1970 = vand.u32 %v1969, 4294901760
    %1971 = vmatpush1.msra.mxu0 %v1970
    %v1972 = vand.u32 %v1861, 4294901760
    %v1973 = vsub.f32 %v1861, %v1972
    %v1974 = vand.u32 %v1973, 4294901760
    %v1975 = vsub.f32 %v1973, %v1974
    %v1976 = vand.u32 %v1975, 4294901760
    %1977 = vmatprep.subr.mxu0 %v1976
    %v1978 = vand.u32 %v1860, 4294901760
    %v1979 = vsub.f32 %v1860, %v1978
    %v1980 = vand.u32 %v1979, 4294901760
    %v1981 = vsub.f32 %v1979, %v1980
    %v1982 = vand.u32 %v1981, 4294901760
    %1983 = vmatpush1.msra.mxu0 %v1982
    %v1984 = vand.u32 %v1863, 4294901760
    %v1985 = vsub.f32 %v1863, %v1984
    %v1986 = vand.u32 %v1985, 4294901760
    %v1987 = vsub.f32 %v1985, %v1986
    %v1988 = vand.u32 %v1987, 4294901760
    %1989 = vmatprep.subr.mxu0 %v1988
    %v1990 = vand.u32 %v1862, 4294901760
    %v1991 = vsub.f32 %v1862, %v1990
    %v1992 = vand.u32 %v1991, 4294901760
    %v1993 = vsub.f32 %v1991, %v1992
    %v1994 = vand.u32 %v1993, 4294901760
    %1995 = vmatpush1.msra.mxu0 %v1994
    %1996 = vmatprep.subr.mxu0 0.0
    %1997 = vmatpush1.msra.mxu0 0.0
    %1998 = vmatprep.subr.mxu0 0.0
    %1999 = vmatpush1.msra.mxu0 0.0
    %2000 = vmatprep.subr.mxu0 0.0
    %2001 = vmatpush1.msra.mxu0 0.0
    %2002 = vmatprep.subr.mxu0 0.0
    %2003 = vmatpush1.msra.mxu0 0.0
    %2004 = vmatprep.subr.mxu0 0.0
    %2005 = vmatpush1.msra.mxu0 0.0
    %2006 = vmatprep.subr.mxu0 0.0
    %2007 = vmatpush1.msra.mxu0 0.0
    %2008 = vmatprep.subr.mxu0 0.0
    %2009 = vmatpush1.msra.mxu0 0.0
    %2010 = vmatprep.subr.mxu0 0.0
    %2011 = vmatpush1.msra.mxu0 0.0
    %2012 = vmatprep.subr.mxu0 0.0
    %2013 = vmatpush1.msra.mxu0 0.0
    %2014 = vmatprep.subr.mxu0 0.0
    %2015 = vmatpush1.msra.mxu0 0.0
    %2016 = vmatprep.subr.mxu0 0.0
    %2017 = vmatpush1.msra.mxu0 0.0
    %2018 = vmatprep.subr.mxu0 0.0
    %2019 = vmatpush1.msra.mxu0 0.0
    %2020 = vmatprep.subr.mxu0 0.0
    %2021 = vmatpush1.msra.mxu0 0.0
    %2022 = vmatprep.subr.mxu0 0.0
    %2023 = vmatpush1.msra.mxu0 0.0
    %2024 = vmatprep.subr.mxu0 0.0
    %2025 = vmatpush1.msra.mxu0 0.0
    %2026 = vmatprep.subr.mxu0 0.0
    %2027 = vmatpush1.msra.mxu0 0.0
    %2028 = vmatprep.subr.mxu0 0.0
    %2029 = vmatpush1.msra.mxu0 0.0
    %2030 = vmatprep.subr.mxu0 0.0
    %2031 = vmatpush1.msra.mxu0 0.0
    %2032 = vmatprep.subr.mxu0 0.0
    %2033 = vmatpush1.msra.mxu0 0.0
    %2034 = vmatprep.subr.mxu0 0.0
    %2035 = vmatpush1.msra.mxu0 0.0
    %2036 = vmatprep.subr.mxu0 0.0
    %2037 = vmatpush1.msra.mxu0 0.0
    %2038 = vmatprep.subr.mxu0 0.0
    %2039 = vmatpush1.msra.mxu0 0.0
    %2040 = vmatprep.subr.mxu0 0.0
    %2041 = vmatpush1.msra.mxu0 0.0
    %2042 = vmatprep.subr.mxu0 0.0
    %2043 = vmatpush1.msra.mxu0 0.0
    %2044 = vmatprep.subr.mxu0 0.0
    %2045 = vmatpush1.msra.mxu0 0.0
    %2046 = vmatprep.subr.mxu0 0.0
    %2047 = vmatpush1.msra.mxu0 0.0
    %2048 = vmatprep.subr.mxu0 0.0
    %2049 = vmatpush1.msra.mxu0 0.0
    %2050 = vmatprep.subr.mxu0 0.0
    %2051 = vmatpush1.msra.mxu0 0.0
    %2052 = vmatprep.mubr.f32.mxu0 0.0
    %v2053 = vand.u32 %v681, 4294901760
    %2054 = vmatmul.mubr.f32.gmra.mrb[0].mxu0 %v2053
    %v2055 = vpop.f32.mrb[0].mxu0
    %v2056 = vadd.f32 %v1944, %v2055
    %v2057 = vpop.f32.mrb[0].mxu0
    %v2058 = vadd.f32 %v1946, %v2057
    %2059 = vdwg.mxu0
    %v2060 = vand.u32 %v1857, 4294901760
    %v2061 = vsub.f32 %v1857, %v2060
    %2062 = vmatprep.subr.mxu0 %v2061
    %v2063 = vand.u32 %v1856, 4294901760
    %v2064 = vsub.f32 %v1856, %v2063
    %2065 = vmatpush1.msra.mxu0 %v2064
    %v2066 = vand.u32 %v1859, 4294901760
    %v2067 = vsub.f32 %v1859, %v2066
    %2068 = vmatprep.subr.mxu0 %v2067
    %v2069 = vand.u32 %v1858, 4294901760
    %v2070 = vsub.f32 %v1858, %v2069
    %2071 = vmatpush1.msra.mxu0 %v2070
    %v2072 = vand.u32 %v1861, 4294901760
    %v2073 = vsub.f32 %v1861, %v2072
    %2074 = vmatprep.subr.mxu0 %v2073
    %v2075 = vand.u32 %v1860, 4294901760
    %v2076 = vsub.f32 %v1860, %v2075
    %2077 = vmatpush1.msra.mxu0 %v2076
    %v2078 = vand.u32 %v1863, 4294901760
    %v2079 = vsub.f32 %v1863, %v2078
    %2080 = vmatprep.subr.mxu0 %v2079
    %v2081 = vand.u32 %v1862, 4294901760
    %v2082 = vsub.f32 %v1862, %v2081
    %2083 = vmatpush1.msra.mxu0 %v2082
    %2084 = vmatprep.subr.mxu0 0.0
    %2085 = vmatpush1.msra.mxu0 0.0
    %2086 = vmatprep.subr.mxu0 0.0
    %2087 = vmatpush1.msra.mxu0 0.0
    %2088 = vmatprep.subr.mxu0 0.0
    %2089 = vmatpush1.msra.mxu0 0.0
    %2090 = vmatprep.subr.mxu0 0.0
    %2091 = vmatpush1.msra.mxu0 0.0
    %2092 = vmatprep.subr.mxu0 0.0
    %2093 = vmatpush1.msra.mxu0 0.0
    %2094 = vmatprep.subr.mxu0 0.0
    %2095 = vmatpush1.msra.mxu0 0.0
    %2096 = vmatprep.subr.mxu0 0.0
    %2097 = vmatpush1.msra.mxu0 0.0
    %2098 = vmatprep.subr.mxu0 0.0
    %2099 = vmatpush1.msra.mxu0 0.0
    %2100 = vmatprep.subr.mxu0 0.0
    %2101 = vmatpush1.msra.mxu0 0.0
    %2102 = vmatprep.subr.mxu0 0.0
    %2103 = vmatpush1.msra.mxu0 0.0
    %2104 = vmatprep.subr.mxu0 0.0
    %2105 = vmatpush1.msra.mxu0 0.0
    %2106 = vmatprep.subr.mxu0 0.0
    %2107 = vmatpush1.msra.mxu0 0.0
    %2108 = vmatprep.subr.mxu0 0.0
    %2109 = vmatpush1.msra.mxu0 0.0
    %2110 = vmatprep.subr.mxu0 0.0
    %2111 = vmatpush1.msra.mxu0 0.0
    %2112 = vmatprep.subr.mxu0 0.0
    %2113 = vmatpush1.msra.mxu0 0.0
    %2114 = vmatprep.subr.mxu0 0.0
    %2115 = vmatpush1.msra.mxu0 0.0
    %2116 = vmatprep.subr.mxu0 0.0
    %2117 = vmatpush1.msra.mxu0 0.0
    %2118 = vmatprep.subr.mxu0 0.0
    %2119 = vmatpush1.msra.mxu0 0.0
    %2120 = vmatprep.subr.mxu0 0.0
    %2121 = vmatpush1.msra.mxu0 0.0
    %2122 = vmatprep.subr.mxu0 0.0
    %2123 = vmatpush1.msra.mxu0 0.0
    %2124 = vmatprep.subr.mxu0 0.0
    %2125 = vmatpush1.msra.mxu0 0.0
    %2126 = vmatprep.subr.mxu0 0.0
    %2127 = vmatpush1.msra.mxu0 0.0
    %2128 = vmatprep.subr.mxu0 0.0
    %2129 = vmatpush1.msra.mxu0 0.0
    %2130 = vmatprep.subr.mxu0 0.0
    %2131 = vmatpush1.msra.mxu0 0.0
    %2132 = vmatprep.subr.mxu0 0.0
    %2133 = vmatpush1.msra.mxu0 0.0
    %2134 = vmatprep.subr.mxu0 0.0
    %2135 = vmatpush1.msra.mxu0 0.0
    %2136 = vmatprep.subr.mxu0 0.0
    %2137 = vmatpush1.msra.mxu0 0.0
    %2138 = vmatprep.subr.mxu0 0.0
    %2139 = vmatpush1.msra.mxu0 0.0
    %2140 = vmatprep.mubr.f32.mxu0 0.0
    %v2141 = vand.u32 %v681, 4294901760
    %v2142 = vsub.f32 %v681, %v2141
    %2143 = vmatmul.mubr.f32.gmra.mrb[0].mxu0 %v2142
    %v2144 = vpop.f32.mrb[0].mxu0
    %v2145 = vadd.f32 %v2056, %v2144
    %v2146 = vpop.f32.mrb[0].mxu0
    %v2147 = vadd.f32 %v2058, %v2146
    %2148 = vdwg.mxu0
    %v2149 = vand.u32 %v1857, 4294901760
    %2150 = vmatprep.subr.mxu0 %v2149
    %v2151 = vand.u32 %v1856, 4294901760
    %2152 = vmatpush1.msra.mxu0 %v2151
    %v2153 = vand.u32 %v1859, 4294901760
    %2154 = vmatprep.subr.mxu0 %v2153
    %v2155 = vand.u32 %v1858, 4294901760
    %2156 = vmatpush1.msra.mxu0 %v2155
    %v2157 = vand.u32 %v1861, 4294901760
    %2158 = vmatprep.subr.mxu0 %v2157
    %v2159 = vand.u32 %v1860, 4294901760
    %2160 = vmatpush1.msra.mxu0 %v2159
    %v2161 = vand.u32 %v1863, 4294901760
    %2162 = vmatprep.subr.mxu0 %v2161
    %v2163 = vand.u32 %v1862, 4294901760
    %2164 = vmatpush1.msra.mxu0 %v2163
    %2165 = vmatprep.subr.mxu0 0.0
    %2166 = vmatpush1.msra.mxu0 0.0
    %2167 = vmatprep.subr.mxu0 0.0
    %2168 = vmatpush1.msra.mxu0 0.0
    %2169 = vmatprep.subr.mxu0 0.0
    %2170 = vmatpush1.msra.mxu0 0.0
    %2171 = vmatprep.subr.mxu0 0.0
    %2172 = vmatpush1.msra.mxu0 0.0
    %2173 = vmatprep.subr.mxu0 0.0
    %2174 = vmatpush1.msra.mxu0 0.0
    %2175 = vmatprep.subr.mxu0 0.0
    %2176 = vmatpush1.msra.mxu0 0.0
    %2177 = vmatprep.subr.mxu0 0.0
    %2178 = vmatpush1.msra.mxu0 0.0
    %2179 = vmatprep.subr.mxu0 0.0
    %2180 = vmatpush1.msra.mxu0 0.0
    %2181 = vmatprep.subr.mxu0 0.0
    %2182 = vmatpush1.msra.mxu0 0.0
    %2183 = vmatprep.subr.mxu0 0.0
    %2184 = vmatpush1.msra.mxu0 0.0
    %2185 = vmatprep.subr.mxu0 0.0
    %2186 = vmatpush1.msra.mxu0 0.0
    %2187 = vmatprep.subr.mxu0 0.0
    %2188 = vmatpush1.msra.mxu0 0.0
    %2189 = vmatprep.subr.mxu0 0.0
    %2190 = vmatpush1.msra.mxu0 0.0
    %2191 = vmatprep.subr.mxu0 0.0
    %2192 = vmatpush1.msra.mxu0 0.0
    %2193 = vmatprep.subr.mxu0 0.0
    %2194 = vmatpush1.msra.mxu0 0.0
    %2195 = vmatprep.subr.mxu0 0.0
    %2196 = vmatpush1.msra.mxu0 0.0
    %2197 = vmatprep.subr.mxu0 0.0
    %2198 = vmatpush1.msra.mxu0 0.0
    %2199 = vmatprep.subr.mxu0 0.0
    %2200 = vmatpush1.msra.mxu0 0.0
    %2201 = vmatprep.subr.mxu0 0.0
    %2202 = vmatpush1.msra.mxu0 0.0
    %2203 = vmatprep.subr.mxu0 0.0
    %2204 = vmatpush1.msra.mxu0 0.0
    %2205 = vmatprep.subr.mxu0 0.0
    %2206 = vmatpush1.msra.mxu0 0.0
    %2207 = vmatprep.subr.mxu0 0.0
    %2208 = vmatpush1.msra.mxu0 0.0
    %2209 = vmatprep.subr.mxu0 0.0
    %2210 = vmatpush1.msra.mxu0 0.0
    %2211 = vmatprep.subr.mxu0 0.0
    %2212 = vmatpush1.msra.mxu0 0.0
    %2213 = vmatprep.subr.mxu0 0.0
    %2214 = vmatpush1.msra.mxu0 0.0
    %2215 = vmatprep.subr.mxu0 0.0
    %2216 = vmatpush1.msra.mxu0 0.0
    %2217 = vmatprep.subr.mxu0 0.0
    %2218 = vmatpush1.msra.mxu0 0.0
    %2219 = vmatprep.subr.mxu0 0.0
    %2220 = vmatpush1.msra.mxu0 0.0
    %2221 = vmatprep.mubr.f32.mxu0 0.0
    %v2222 = vand.u32 %v681, 4294901760
    %v2223 = vsub.f32 %v681, %v2222
    %v2224 = vand.u32 %v2223, 4294901760
    %2225 = vmatmul.mubr.f32.gmra.mrb[0].mxu0 %v2224
    %v2226 = vpop.f32.mrb[0].mxu0
    %v2227 = vadd.f32 %v2145, %v2226
    %v2228 = vpop.f32.mrb[0].mxu0
    %v2229 = vadd.f32 %v2147, %v2228
    %2230 = vdwg.mxu0
    %v2231 = vand.u32 %v1857, 4294901760
    %v2232 = vsub.f32 %v1857, %v2231
    %v2233 = vand.u32 %v2232, 4294901760
    %2234 = vmatprep.subr.mxu0 %v2233
    %v2235 = vand.u32 %v1856, 4294901760
    %v2236 = vsub.f32 %v1856, %v2235
    %v2237 = vand.u32 %v2236, 4294901760
    %2238 = vmatpush1.msra.mxu0 %v2237
    %v2239 = vand.u32 %v1859, 4294901760
    %v2240 = vsub.f32 %v1859, %v2239
    %v2241 = vand.u32 %v2240, 4294901760
    %2242 = vmatprep.subr.mxu0 %v2241
    %v2243 = vand.u32 %v1858, 4294901760
    %v2244 = vsub.f32 %v1858, %v2243
    %v2245 = vand.u32 %v2244, 4294901760
    %2246 = vmatpush1.msra.mxu0 %v2245
    %v2247 = vand.u32 %v1861, 4294901760
    %v2248 = vsub.f32 %v1861, %v2247
    %v2249 = vand.u32 %v2248, 4294901760
    %2250 = vmatprep.subr.mxu0 %v2249
    %v2251 = vand.u32 %v1860, 4294901760
    %v2252 = vsub.f32 %v1860, %v2251
    %v2253 = vand.u32 %v2252, 4294901760
    %2254 = vmatpush1.msra.mxu0 %v2253
    %v2255 = vand.u32 %v1863, 4294901760
    %v2256 = vsub.f32 %v1863, %v2255
    %v2257 = vand.u32 %v2256, 4294901760
    %2258 = vmatprep.subr.mxu0 %v2257
    %v2259 = vand.u32 %v1862, 4294901760
    %v2260 = vsub.f32 %v1862, %v2259
    %v2261 = vand.u32 %v2260, 4294901760
    %2262 = vmatpush1.msra.mxu0 %v2261
    %2263 = vmatprep.subr.mxu0 0.0
    %2264 = vmatpush1.msra.mxu0 0.0
    %2265 = vmatprep.subr.mxu0 0.0
    %2266 = vmatpush1.msra.mxu0 0.0
    %2267 = vmatprep.subr.mxu0 0.0
    %2268 = vmatpush1.msra.mxu0 0.0
    %2269 = vmatprep.subr.mxu0 0.0
    %2270 = vmatpush1.msra.mxu0 0.0
    %2271 = vmatprep.subr.mxu0 0.0
    %2272 = vmatpush1.msra.mxu0 0.0
    %2273 = vmatprep.subr.mxu0 0.0
    %2274 = vmatpush1.msra.mxu0 0.0
    %2275 = vmatprep.subr.mxu0 0.0
    %2276 = vmatpush1.msra.mxu0 0.0
    %2277 = vmatprep.subr.mxu0 0.0
    %2278 = vmatpush1.msra.mxu0 0.0
    %2279 = vmatprep.subr.mxu0 0.0
    %2280 = vmatpush1.msra.mxu0 0.0
    %2281 = vmatprep.subr.mxu0 0.0
    %2282 = vmatpush1.msra.mxu0 0.0
    %2283 = vmatprep.subr.mxu0 0.0
    %2284 = vmatpush1.msra.mxu0 0.0
    %2285 = vmatprep.subr.mxu0 0.0
    %2286 = vmatpush1.msra.mxu0 0.0
    %2287 = vmatprep.subr.mxu0 0.0
    %2288 = vmatpush1.msra.mxu0 0.0
    %2289 = vmatprep.subr.mxu0 0.0
    %2290 = vmatpush1.msra.mxu0 0.0
    %2291 = vmatprep.subr.mxu0 0.0
    %2292 = vmatpush1.msra.mxu0 0.0
    %2293 = vmatprep.subr.mxu0 0.0
    %2294 = vmatpush1.msra.mxu0 0.0
    %2295 = vmatprep.subr.mxu0 0.0
    %2296 = vmatpush1.msra.mxu0 0.0
    %2297 = vmatprep.subr.mxu0 0.0
    %2298 = vmatpush1.msra.mxu0 0.0
    %2299 = vmatprep.subr.mxu0 0.0
    %2300 = vmatpush1.msra.mxu0 0.0
    %2301 = vmatprep.subr.mxu0 0.0
    %2302 = vmatpush1.msra.mxu0 0.0
    %2303 = vmatprep.subr.mxu0 0.0
    %2304 = vmatpush1.msra.mxu0 0.0
    %2305 = vmatprep.subr.mxu0 0.0
    %2306 = vmatpush1.msra.mxu0 0.0
    %2307 = vmatprep.subr.mxu0 0.0
    %2308 = vmatpush1.msra.mxu0 0.0
    %2309 = vmatprep.subr.mxu0 0.0
    %2310 = vmatpush1.msra.mxu0 0.0
    %2311 = vmatprep.subr.mxu0 0.0
    %2312 = vmatpush1.msra.mxu0 0.0
    %2313 = vmatprep.subr.mxu0 0.0
    %2314 = vmatpush1.msra.mxu0 0.0
    %2315 = vmatprep.subr.mxu0 0.0
    %2316 = vmatpush1.msra.mxu0 0.0
    %2317 = vmatprep.subr.mxu0 0.0
    %2318 = vmatpush1.msra.mxu0 0.0
    %2319 = vmatprep.mubr.f32.mxu0 0.0
    %v2320 = vand.u32 %v681, 4294901760
    %2321 = vmatmul.mubr.f32.gmra.mrb[0].mxu0 %v2320
    %v2322 = vpop.f32.mrb[0].mxu0
    %v2323 = vadd.f32 %v2227, %v2322
    %v2324 = vpop.f32.mrb[0].mxu0
    %v2325 = vadd.f32 %v2229, %v2324
    %2326 = vdwg.mxu0
    %v2327 = vand.u32 %v1857, 4294901760
    %2328 = vmatprep.subr.mxu0 %v2327
    %v2329 = vand.u32 %v1856, 4294901760
    %2330 = vmatpush1.msra.mxu0 %v2329
    %v2331 = vand.u32 %v1859, 4294901760
    %2332 = vmatprep.subr.mxu0 %v2331
    %v2333 = vand.u32 %v1858, 4294901760
    %2334 = vmatpush1.msra.mxu0 %v2333
    %v2335 = vand.u32 %v1861, 4294901760
    %2336 = vmatprep.subr.mxu0 %v2335
    %v2337 = vand.u32 %v1860, 4294901760
    %2338 = vmatpush1.msra.mxu0 %v2337
    %v2339 = vand.u32 %v1863, 4294901760
    %2340 = vmatprep.subr.mxu0 %v2339
    %v2341 = vand.u32 %v1862, 4294901760
    %2342 = vmatpush1.msra.mxu0 %v2341
    %2343 = vmatprep.subr.mxu0 0.0
    %2344 = vmatpush1.msra.mxu0 0.0
    %2345 = vmatprep.subr.mxu0 0.0
    %2346 = vmatpush1.msra.mxu0 0.0
    %2347 = vmatprep.subr.mxu0 0.0
    %2348 = vmatpush1.msra.mxu0 0.0
    %2349 = vmatprep.subr.mxu0 0.0
    %2350 = vmatpush1.msra.mxu0 0.0
    %2351 = vmatprep.subr.mxu0 0.0
    %2352 = vmatpush1.msra.mxu0 0.0
    %2353 = vmatprep.subr.mxu0 0.0
    %2354 = vmatpush1.msra.mxu0 0.0
    %2355 = vmatprep.subr.mxu0 0.0
    %2356 = vmatpush1.msra.mxu0 0.0
    %2357 = vmatprep.subr.mxu0 0.0
    %2358 = vmatpush1.msra.mxu0 0.0
    %2359 = vmatprep.subr.mxu0 0.0
    %2360 = vmatpush1.msra.mxu0 0.0
    %2361 = vmatprep.subr.mxu0 0.0
    %2362 = vmatpush1.msra.mxu0 0.0
    %2363 = vmatprep.subr.mxu0 0.0
    %2364 = vmatpush1.msra.mxu0 0.0
    %2365 = vmatprep.subr.mxu0 0.0
    %2366 = vmatpush1.msra.mxu0 0.0
    %2367 = vmatprep.subr.mxu0 0.0
    %2368 = vmatpush1.msra.mxu0 0.0
    %2369 = vmatprep.subr.mxu0 0.0
    %2370 = vmatpush1.msra.mxu0 0.0
    %2371 = vmatprep.subr.mxu0 0.0
    %2372 = vmatpush1.msra.mxu0 0.0
    %2373 = vmatprep.subr.mxu0 0.0
    %2374 = vmatpush1.msra.mxu0 0.0
    %2375 = vmatprep.subr.mxu0 0.0
    %2376 = vmatpush1.msra.mxu0 0.0
    %2377 = vmatprep.subr.mxu0 0.0
    %2378 = vmatpush1.msra.mxu0 0.0
    %2379 = vmatprep.subr.mxu0 0.0
    %2380 = vmatpush1.msra.mxu0 0.0
    %2381 = vmatprep.subr.mxu0 0.0
    %2382 = vmatpush1.msra.mxu0 0.0
    %2383 = vmatprep.subr.mxu0 0.0
    %2384 = vmatpush1.msra.mxu0 0.0
    %2385 = vmatprep.subr.mxu0 0.0
    %2386 = vmatpush1.msra.mxu0 0.0
    %2387 = vmatprep.subr.mxu0 0.0
    %2388 = vmatpush1.msra.mxu0 0.0
    %2389 = vmatprep.subr.mxu0 0.0
    %2390 = vmatpush1.msra.mxu0 0.0
    %2391 = vmatprep.subr.mxu0 0.0
    %2392 = vmatpush1.msra.mxu0 0.0
    %2393 = vmatprep.subr.mxu0 0.0
    %2394 = vmatpush1.msra.mxu0 0.0
    %2395 = vmatprep.subr.mxu0 0.0
    %2396 = vmatpush1.msra.mxu0 0.0
    %2397 = vmatprep.subr.mxu0 0.0
    %2398 = vmatpush1.msra.mxu0 0.0
    %2399 = vmatprep.mubr.f32.mxu0 0.0
    %v2400 = vand.u32 %v681, 4294901760
    %2401 = vmatmul.mubr.f32.gmra.mrb[0].mxu0 %v2400
    %v2402 = vpop.f32.mrb[0].mxu0
    %v2403 = vadd.f32 %v2323, %v2402
    %v2404 = vpop.f32.mrb[0].mxu0
    %v2405 = vadd.f32 %v2325, %v2404
    %2406 = vdwg.mxu0
    %v2409 = vrot.slane %v2403, 4
    %v2410 = vrot.slane %v2405, 4
    %v2413 = vsel %vm39, %v1222, %v2409
    %v2414 = vsel %vm39, %v1224, %v2410
    %2415 = vst [vmem:[#allocation2] sm:$0xff] %v2413
    %2416 = vst [vmem:[#allocation2 + $0x8] sm:$0xff] %v2414
    // Predicated region
    $region18: #{tpu_custom_call.1} parent=1 // pred_check
      _
    $region19: #{tpu_custom_call.1} parent=1 // pred_check_branch
      %2418 = sbr.rel (0) target = $region21
    $region20: #{tpu_custom_call.1} parent=1 // pred_region
      %s2420 = ssub.s32 256, 256
      %2421 = vsyncadd [#allocation3], %s2420
      %s2423 = sshll.u32 [#allocation2], 4
      %s2424 = int_to_ptr.vmem [resolvable:$true] %s2423
      %2426 = dma.vmem_to_hbm [thread:$0]  %s2424, 256, %s4, [#allocation3]
    $region21: #{tpu_custom_call.1} parent=1 // pred_fallthru
      _
    // Predicated region
    $region22: #{tpu_custom_call.1} parent=1 // pred_check
      _
    $region23: #{tpu_custom_call.1} parent=1 // pred_check_branch
      %2428 = sbr.rel (0) target = $region25
    $region24: #{tpu_custom_call.1} parent=1 // pred_region
      %2429 = dma.done [#allocation3], 256
    $region25: #{tpu_custom_call.1} parent=1 // pred_fallthru
      _
    %2430 = vsyncpa [#allocation3], 1

</llo_original>
